<compile_context>
chip_gen: v7x
topology: tpu7x:2x2x1
jax: 0.10.0
libtpu: 0.0.40
codegen_flags: <defaults>
</compile_context>

<pallas_src>
import numpy as np
import jax
import jax.numpy as jnp
from jax import lax
from jax.experimental import pallas as pl
from jax.experimental.pallas import tpu as pltpu

_EPS = 1e-5
_LANES = 128
_SUBLANES = 8


def _round_up(x, m):
    return (x + m - 1) // m * m


# --------------------------- init-time weight rewrite ----------------------- #

def _conv_bn_as_matmul(w_kkio, bias, gamma, beta, mean, var, H, W, stride, pad):
    """Exact rewrite of Conv2d(+eval BatchNorm2d) as  y_flat = x_flat @ Wbig + shift.

    Flatten ordering is PyTorch's (C, H, W) on both input and output, so chained conv
    layers and the final nn.Flatten()+Linear need no runtime transpose.
    """
    k, _, cin, cout = w_kkio.shape
    Ho = (H + 2 * pad - k) // stride + 1
    Wo = (W + 2 * pad - k) // stride + 1
    w_np = np.asarray(w_kkio, np.float32)
    Wm = np.zeros((cin, H, W, cout, Ho, Wo), np.float32)
    for kh in range(k):
        for kw in range(k):
            for ho in range(Ho):
                hi = ho * stride - pad + kh
                if hi < 0 or hi >= H:
                    continue
                for wo in range(Wo):
                    wi = wo * stride - pad + kw
                    if wi < 0 or wi >= W:
                        continue
                    Wm[:, hi, wi, :, ho, wo] += w_np[kh, kw]
    scale = np.asarray(gamma, np.float32) / np.sqrt(np.asarray(var, np.float32) + _EPS)
    shift = np.asarray(beta, np.float32) + scale * (np.asarray(bias, np.float32)
                                                    - np.asarray(mean, np.float32))
    Wm *= scale[None, None, None, :, None, None]           # fold BN scale into weights
    Wbig = Wm.reshape(cin * H * W, cout * Ho * Wo)
    shift_row = np.repeat(shift, Ho * Wo)[None, :].astype(np.float32)
    return Wbig, shift_row, Ho, Wo


def init_params(key, input_size, num_classes, in_channel, out_channels, kernels,
                strides, dropouts=None):
    """Returns (params, raw).  `params` contains only arrays (weights stored bf16);
    `raw` keeps original-layout f32 weights for a pure-JAX reference check."""
    del dropouts  # eval-mode Dropout is the identity
    size, in_c = input_size, in_channel
    layers = []
    raw = {"convs": []}
    for out_c, k, s in zip(out_channels, kernels, strides):
        key, k1, k2 = jax.random.split(key, 3)
        w = jax.random.normal(k1, (k, k, in_c, out_c), jnp.float32) * 0.1
        b = jax.random.normal(k2, (out_c,), jnp.float32) * 0.1
        gamma = np.ones((out_c,), np.float32)
        beta = np.zeros((out_c,), np.float32)
        mean = np.zeros((out_c,), np.float32)
        var = np.ones((out_c,), np.float32)
        p = (k - s + 1) // 2
        Wbig, shift, Ho, Wo = _conv_bn_as_matmul(w, b, gamma, beta, mean, var,
                                                 size, size, s, p)
        # Weights in bf16 (halve HBM bytes, native bf16 MXU); biases stay f32 (tiny).
        layers.append((jnp.asarray(Wbig, jnp.bfloat16), jnp.asarray(shift, jnp.float32)))
        raw["convs"].append(dict(w=w, b=b, gamma=jnp.asarray(gamma), beta=jnp.asarray(beta),
                                 mean=jnp.asarray(mean), var=jnp.asarray(var), s=s, p=p))
        size, in_c = Ho, out_c

    feat = in_c * size * size
    key, k1, k2 = jax.random.split(key, 3)
    fc_w = np.asarray(jax.random.normal(k1, (feat, num_classes), jnp.float32) * 0.05)
    fc_b = np.asarray(jax.random.normal(k2, (num_classes,), jnp.float32) * 0.05)
    gamma = np.ones((num_classes,), np.float32)
    beta = np.zeros((num_classes,), np.float32)
    mean = np.zeros((num_classes,), np.float32)
    var = np.ones((num_classes,), np.float32)
    scale = gamma / np.sqrt(var + _EPS)
    shift = beta + scale * (fc_b - mean)
    n_pad = max(_LANES, _round_up(num_classes, _LANES))     # lane-dense output: 10 -> 128
    Wfc = np.zeros((feat, n_pad), np.float32)
    Wfc[:, :num_classes] = fc_w * scale[None, :]
    bfc = np.zeros((1, n_pad), np.float32)
    bfc[:, :num_classes] = shift
    layers.append((jnp.asarray(Wfc, jnp.bfloat16), jnp.asarray(bfc, jnp.float32)))

    raw["fc_w"] = jnp.asarray(fc_w)
    raw["fc_b"] = jnp.asarray(fc_b)
    raw["bn1d"] = dict(gamma=jnp.asarray(gamma), beta=jnp.asarray(beta),
                       mean=jnp.asarray(mean), var=jnp.asarray(var))
    return {"layers": layers}, raw


# ------------------------------ fused Pallas kernel ------------------------- #

def classifier_forward(params, x_nchw, num_classes):
    layers = params["layers"]                 # [(Wbig, bias_row), ...]; last = FC(+BN1d)
    w1, b1 = layers[0]
    rest = layers[1:]
    n = x_nchw.shape[0]
    x = x_nchw.reshape(n, -1)                 # PyTorch flatten order (C, H, W)

    # Pad batch to full sublanes; tile M when the batch grows (axis marked "parallel"
    # so v7x can split it over its two TensorCores).  Batching more real rows per call
    # is the cheapest way to amortize weight DMA.
    m = _round_up(max(n, _SUBLANES), _SUBLANES)
    if m > 256:
        m = _round_up(m, 256)
        tm = 256
    else:
        tm = m
    x = jnp.pad(x, ((0, m - n), (0, 0))).astype(jnp.bfloat16)

    K1, N1 = w1.shape
    n_cls_pad = rest[-1][0].shape[1]

    # K-tile layer 1 (the big folded weight) so its DMA overlaps MXU work and VMEM
    # stays bounded as the model scales.  Tile must stay a multiple of 128 lanes.
    tk = K1
    while tk > 256 and tk % 2 == 0 and (tk // 2) % _LANES == 0:
        if tk * N1 * 2 <= 512 * 1024:        # bf16 bytes of one W1 block
            break
        tk //= 2
    k_tiles = K1 // tk
    m_tiles = m // tm
    n_rest = len(rest)

    def kernel(*refs):
        x_ref, w1_ref, b1_ref = refs[0], refs[1], refs[2]
        out_ref, acc_ref = refs[-2], refs[-1]
        mids = refs[3:-2]                     # (w2, b2, ..., wfc, bfc)
        kk = pl.program_id(1)

        @pl.when(kk == 0)
        def _():
            acc_ref[...] = jnp.zeros_like(acc_ref)

        # Layer-1 (conv1 + folded BN) partial product, f32 accumulation in VMEM.
        acc_ref[...] += jnp.dot(x_ref[...], w1_ref[...],
                                preferred_element_type=jnp.float32)

        @pl.when(kk == pl.num_programs(1) - 1)
        def _():
            h = jnp.maximum(acc_ref[...] + b1_ref[...], 0.0)   # ReLU (Dropout = identity)
            for li in range(n_rest):
                w = mids[2 * li][...]
                b = mids[2 * li + 1][...]
                h = jnp.dot(h.astype(jnp.bfloat16), w,
                            preferred_element_type=jnp.float32) + b
                if li < n_rest - 1:
                    h = jnp.maximum(h, 0.0)                    # ReLU on conv layers only
            # Numerically stable softmax, masked to the real class columns (f32 on VPU/EUP).
            col = lax.broadcasted_iota(jnp.int32, h.shape, 1)
            h = jnp.where(col < num_classes, h, -1e30)
            hmax = jnp.max(h, axis=-1, keepdims=True)
            e = jnp.exp(h - hmax)
            s = jnp.sum(e, axis=-1, keepdims=True)
            r = pl.reciprocal(s, approx=True)                  # EUP divide
            r = r * (2.0 - s * r)                              # one Newton step -> full f32
            out_ref[...] = e * r

    operands = [x, w1, b1]
    in_specs = [
        pl.BlockSpec((tm, tk), lambda i, k: (i, k)),           # activations: M x K tiles
        pl.BlockSpec((tk, N1), lambda i, k: (k, 0)),           # layer-1 weight: K tiles
        pl.BlockSpec(b1.shape, lambda i, k: (0, 0)),
    ]
    for w, b in rest:                                          # grid-invariant (resident)
        operands += [w, b]
        in_specs += [pl.BlockSpec(w.shape, lambda i, k: (0, 0)),
                     pl.BlockSpec(b.shape, lambda i, k: (0, 0))]

    flops = 2 * m * (K1 * N1 + sum(w.shape[0] * w.shape[1] for w, _ in rest))
    bytes_accessed = (x.size * 2 + w1.size * 2 + b1.size * 4
                      + sum(w.size * 2 + b.size * 4 for w, b in rest)
                      + m * n_cls_pad * 4)
    cost = pl.CostEstimate(flops=int(flops),
                           transcendentals=int(m * n_cls_pad),
                           bytes_accessed=int(bytes_accessed))

    out = pl.pallas_call(
        kernel,
        out_shape=jax.ShapeDtypeStruct((m, n_cls_pad), jnp.float32),
        grid=(m_tiles, k_tiles),
        in_specs=in_specs,
        out_specs=pl.BlockSpec((tm, n_cls_pad), lambda i, k: (i, 0)),
        scratch_shapes=[pltpu.VMEM((tm, N1), jnp.float32)],
        compiler_params=pltpu.CompilerParams(
            dimension_semantics=("parallel", "arbitrary"),
            vmem_limit_bytes=32 * 1024 * 1024),
        cost_estimate=cost,
    )(*operands)
    return out[:n, :num_classes]


# ------------------------------ pure-JAX reference -------------------------- #

def reference_forward(raw, x_nchw):
    x = x_nchw.astype(jnp.float32)
    for layer in raw["convs"]:
        w_oihw = jnp.transpose(layer["w"], (3, 2, 0, 1))
        s, p = layer["s"], layer["p"]
        x = lax.conv_general_dilated(x, w_oihw, (s, s), [(p, p), (p, p)],
                                     dimension_numbers=("NCHW", "OIHW", "NCHW"))
        x = x + layer["b"][None, :, None, None]
        x = ((x - layer["mean"][None, :, None, None])
             / jnp.sqrt(layer["var"][None, :, None, None] + _EPS)
             * layer["gamma"][None, :, None, None] + layer["beta"][None, :, None, None])
        x = jnp.maximum(x, 0.0)
    n = x.shape[0]
    x = x.reshape(n, -1)
    y = x @ raw["fc_w"] + raw["fc_b"]
    bn = raw["bn1d"]
    y = (y - bn["mean"]) / jnp.sqrt(bn["var"] + _EPS) * bn["gamma"] + bn["beta"]
    return jax.nn.softmax(y, axis=-1)


# ----------------------------------- main ----------------------------------- #

if __name__ == "__main__":
    # Config: input_size=16, num_classes=10, in_channel=4,
    #         out_channels=[8,16], kernels=[3,3], strides=[2,2], dropouts=[0.1,0.1]
    key = jax.random.PRNGKey(0)
    key, xkey = jax.random.split(key)
    x = jax.random.normal(xkey, (2, 4, 16, 16), jnp.float32)   # NCHW, like PyTorch

    params, raw = init_params(key, input_size=16, num_classes=10, in_channel=4,
                              out_channels=(8, 16), kernels=(3, 3), strides=(2, 2),
                              dropouts=(0.1, 0.1))

    fwd = jax.jit(classifier_forward, static_argnums=(2,))
    out = jax.block_until_ready(fwd(params, x, 10))

    assert out.shape == (2, 10), out.shape
    row_sums = jnp.sum(out, axis=-1)
    assert bool(jnp.all(jnp.abs(row_sums - 1.0) < 1e-4)), row_sums
    assert bool(jnp.all(out >= 0.0))

    ref = reference_forward(raw, x)
    max_err = float(jnp.max(jnp.abs(out - ref)))
    assert max_err < 2e-2, f"mismatch vs pure-JAX reference (bf16 weights): {max_err}"

    print("KERNEL_OK")
</pallas_src>

<mosaic_0001>
module attributes {stable_mosaic.version = 11 : i64} {
  func.func @kernel(%arg0: i32, %arg1: i32, %arg2: memref<8x512xbf16, #tpu.memory_space<vmem>>, %arg3: memref<512x512xbf16, #tpu.memory_space<vmem>>, %arg4: memref<1x512xf32, #tpu.memory_space<vmem>>, %arg5: memref<512x256xbf16, #tpu.memory_space<vmem>>, %arg6: memref<1x256xf32, #tpu.memory_space<vmem>>, %arg7: memref<256x128xbf16, #tpu.memory_space<vmem>>, %arg8: memref<1x128xf32, #tpu.memory_space<vmem>>, %arg9: memref<8x128xf32, #tpu.memory_space<vmem>>, %arg10: memref<8x512xf32, #tpu.memory_space<vmem>>) attributes {dimension_semantics = [#tpu.dimension_semantics<parallel>, #tpu.dimension_semantics<arbitrary>], iteration_bounds = array<i64: 1, 2>, scalar_prefetch = 0 : i64, scratch_operands = 1 : i64, tpu.core_type = #tpu.core_type<tc>, window_params = [{transform_indices = @transform_0, window_bounds = array<i64: 8, 512>}, {transform_indices = @transform_1, window_bounds = array<i64: 512, 512>}, {pipeline_mode = #tpu.pipeline_mode<synchronous>, transform_indices = @transform_2, window_bounds = array<i64: 1, 512>}, {pipeline_mode = #tpu.pipeline_mode<synchronous>, transform_indices = @transform_3, window_bounds = array<i64: 512, 256>}, {pipeline_mode = #tpu.pipeline_mode<synchronous>, transform_indices = @transform_4, window_bounds = array<i64: 1, 256>}, {pipeline_mode = #tpu.pipeline_mode<synchronous>, transform_indices = @transform_5, window_bounds = array<i64: 256, 128>}, {pipeline_mode = #tpu.pipeline_mode<synchronous>, transform_indices = @transform_6, window_bounds = array<i64: 1, 128>}, {transform_indices = @transform_7, window_bounds = array<i64: 8, 128>}]} {
    %c0_i32 = arith.constant 0 : i32
    %0 = arith.cmpi eq, %arg1, %c0_i32 : i32
    %1 = arith.extui %0 : i1 to i32
    %c0_i32_0 = arith.constant 0 : i32
    %2 = arith.cmpi ne, %1, %c0_i32_0 : i32
    scf.if %2 {
      %cst_9 = arith.constant 0.000000e+00 : f32
      %12 = vector.broadcast %cst_9 : f32 to vector<8x512xf32>
      %c0_10 = arith.constant 0 : index
      %c0_11 = arith.constant 0 : index
      %13 = vector.load %arg10[%c0_10, %c0_11] : memref<8x512xf32, #tpu.memory_space<vmem>>, vector<8x512xf32>
      tpu.vector_store %arg10[%c0_10, %c0_11], %12 {strides = array<i32>} : memref<8x512xf32, #tpu.memory_space<vmem>>, vector<8x512xf32>,
    } else {
    }
    %c0 = arith.constant 0 : index
    %c0_1 = arith.constant 0 : index
    %3 = vector.load %arg10[%c0, %c0_1] : memref<8x512xf32, #tpu.memory_space<vmem>>, vector<8x512xf32>
    %c0_2 = arith.constant 0 : index
    %c0_3 = arith.constant 0 : index
    %4 = vector.load %arg2[%c0_2, %c0_3] : memref<8x512xbf16, #tpu.memory_space<vmem>>, vector<8x512xbf16>
    %c0_4 = arith.constant 0 : index
    %c0_5 = arith.constant 0 : index
    %5 = vector.load %arg3[%c0_4, %c0_5] : memref<512x512xbf16, #tpu.memory_space<vmem>>, vector<512x512xbf16>
    %cst = arith.constant dense<0.000000e+00> : vector<8x512xf32>
    %6 = tpu.matmul %4, %5, %cst {dimension_numbers = #tpu.dot_dimension_numbers<[1], [0], [0], [1], [0, 0, 1, 1], [], []>} : vector<8x512xbf16>, vector<512x512xbf16>, vector<8x512xf32> -> vector<8x512xf32>
    %7 = arith.addf %3, %6 : vector<8x512xf32>
    %c0_6 = arith.constant 0 : index
    %c0_7 = arith.constant 0 : index
    %8 = vector.load %arg10[%c0_6, %c0_7] : memref<8x512xf32, #tpu.memory_space<vmem>>, vector<8x512xf32>
    tpu.vector_store %arg10[%c0_6, %c0_7], %7 {strides = array<i32>} : memref<8x512xf32, #tpu.memory_space<vmem>>, vector<8x512xf32>,
    %c1_i32 = arith.constant 1 : i32
    %9 = arith.cmpi eq, %arg1, %c1_i32 : i32
    %10 = arith.extui %9 : i1 to i32
    %c0_i32_8 = arith.constant 0 : i32
    %11 = arith.cmpi ne, %10, %c0_i32_8 : i32
    scf.if %11 {
      %c0_9 = arith.constant 0 : index
      %c0_10 = arith.constant 0 : index
      %12 = vector.load %arg10[%c0_9, %c0_10] : memref<8x512xf32, #tpu.memory_space<vmem>>, vector<8x512xf32>
      %c0_11 = arith.constant 0 : index
      %c0_12 = arith.constant 0 : index
      %13 = vector.load %arg4[%c0_11, %c0_12] : memref<1x512xf32, #tpu.memory_space<vmem>>, vector<1x512xf32>
      %14 = vector.broadcast %13 : vector<1x512xf32> to vector<8x512xf32>
      %15 = arith.addf %12, %14 : vector<8x512xf32>
      %cst_13 = arith.constant 0.000000e+00 : f32
      %16 = vector.broadcast %cst_13 : f32 to vector<8x512xf32>
      %17 = arith.maximumf %15, %16 : vector<8x512xf32>
      %c0_14 = arith.constant 0 : index
      %c0_15 = arith.constant 0 : index
      %18 = vector.load %arg5[%c0_14, %c0_15] : memref<512x256xbf16, #tpu.memory_space<vmem>>, vector<512x256xbf16>
      %c0_16 = arith.constant 0 : index
      %c0_17 = arith.constant 0 : index
      %19 = vector.load %arg6[%c0_16, %c0_17] : memref<1x256xf32, #tpu.memory_space<vmem>>, vector<1x256xf32>
      %20 = arith.truncf %17 : vector<8x512xf32> to vector<8x512xbf16>
      %cst_18 = arith.constant dense<0.000000e+00> : vector<8x256xf32>
      %21 = tpu.matmul %20, %18, %cst_18 {dimension_numbers = #tpu.dot_dimension_numbers<[1], [0], [0], [1], [0, 0, 1, 1], [], []>} : vector<8x512xbf16>, vector<512x256xbf16>, vector<8x256xf32> -> vector<8x256xf32>
      %22 = vector.broadcast %19 : vector<1x256xf32> to vector<8x256xf32>
      %23 = arith.addf %21, %22 : vector<8x256xf32>
      %cst_19 = arith.constant 0.000000e+00 : f32
      %24 = vector.broadcast %cst_19 : f32 to vector<8x256xf32>
      %25 = arith.maximumf %23, %24 : vector<8x256xf32>
      %c0_20 = arith.constant 0 : index
      %c0_21 = arith.constant 0 : index
      %26 = vector.load %arg7[%c0_20, %c0_21] : memref<256x128xbf16, #tpu.memory_space<vmem>>, vector<256x128xbf16>
      %c0_22 = arith.constant 0 : index
      %c0_23 = arith.constant 0 : index
      %27 = vector.load %arg8[%c0_22, %c0_23] : memref<1x128xf32, #tpu.memory_space<vmem>>, vector<1x128xf32>
      %28 = arith.truncf %25 : vector<8x256xf32> to vector<8x256xbf16>
      %cst_24 = arith.constant dense<0.000000e+00> : vector<8x128xf32>
      %29 = tpu.matmul %28, %26, %cst_24 {dimension_numbers = #tpu.dot_dimension_numbers<[1], [0], [0], [1], [0, 0, 1, 1], [], []>} : vector<8x256xbf16>, vector<256x128xbf16>, vector<8x128xf32> -> vector<8x128xf32>
      %30 = vector.broadcast %27 : vector<1x128xf32> to vector<8x128xf32>
      %31 = arith.addf %29, %30 : vector<8x128xf32>
      %32 = tpu.iota {dimensions = array<i32: 1>} : vector<8x128xi32>
      %c10_i32 = arith.constant 10 : i32
      %33 = vector.broadcast %c10_i32 : i32 to vector<8x128xi32>
      %34 = arith.cmpi slt, %32, %33 : vector<8x128xi32>
      %cst_25 = arith.constant -1.000000e+30 : f32
      %35 = vector.broadcast %cst_25 : f32 to vector<8x128xf32>
      %36 = arith.select %34, %31, %35 : vector<8x128xi1>, vector<8x128xf32>
      %cst_26 = arith.constant dense<0xFF800000> : vector<8xf32>
      %37 = vector.multi_reduction <maximumf>, %36, %cst_26 [1] : vector<8x128xf32> to vector<8xf32>
      %38 = vector.shape_cast %37 : vector<8xf32> to vector<8x1xf32>
      %39 = vector.broadcast %38 : vector<8x1xf32> to vector<8x128xf32>
      %40 = arith.subf %36, %39 : vector<8x128xf32>
      %41 = math.exp %40 : vector<8x128xf32>
      %cst_27 = arith.constant dense<0.000000e+00> : vector<8xf32>
      %42 = vector.multi_reduction <add>, %41, %cst_27 [1] : vector<8x128xf32> to vector<8xf32>
      %43 = vector.shape_cast %42 : vector<8xf32> to vector<8x1xf32>
      %44 = tpu.reciprocal %43 {approx = true} : vector<8x1xf32> -> vector<8x1xf32>
      %45 = arith.mulf %43, %44 : vector<8x1xf32>
      %cst_28 = arith.constant 2.000000e+00 : f32
      %46 = vector.broadcast %cst_28 : f32 to vector<8x1xf32>
      %47 = arith.subf %46, %45 : vector<8x1xf32>
      %48 = arith.mulf %44, %47 : vector<8x1xf32>
      %49 = vector.broadcast %48 : vector<8x1xf32> to vector<8x128xf32>
      %50 = arith.mulf %41, %49 : vector<8x128xf32>
      %c0_29 = arith.constant 0 : index
      %c0_30 = arith.constant 0 : index
      %51 = vector.load %arg9[%c0_29, %c0_30] : memref<8x128xf32, #tpu.memory_space<vmem>>, vector<8x128xf32>
      tpu.vector_store %arg9[%c0_29, %c0_30], %50 {strides = array<i32>} : memref<8x128xf32, #tpu.memory_space<vmem>>, vector<8x128xf32>,
    } else {
    }
    return
  }
  func.func @transform_0(%arg0: i32, %arg1: i32) -> (i32, i32) {
    %c0_i32 = arith.constant 0 : i32
    return %arg0, %arg1 : i32, i32
  }
  func.func @transform_1(%arg0: i32, %arg1: i32) -> (i32, i32) {
    %c0_i32 = arith.constant 0 : i32
    %c0_i32_0 = arith.constant 0 : i32
    return %arg1, %c0_i32 : i32, i32
  }
  func.func @transform_2(%arg0: i32, %arg1: i32) -> (i32, i32) {
    %c0_i32 = arith.constant 0 : i32
    %c0_i32_0 = arith.constant 0 : i32
    %c0_i32_1 = arith.constant 0 : i32
    return %c0_i32, %c0_i32_0 : i32, i32
  }
  func.func @transform_3(%arg0: i32, %arg1: i32) -> (i32, i32) {
    %c0_i32 = arith.constant 0 : i32
    %c0_i32_0 = arith.constant 0 : i32
    %c0_i32_1 = arith.constant 0 : i32
    return %c0_i32, %c0_i32_0 : i32, i32
  }
  func.func @transform_4(%arg0: i32, %arg1: i32) -> (i32, i32) {
    %c0_i32 = arith.constant 0 : i32
    %c0_i32_0 = arith.constant 0 : i32
    %c0_i32_1 = arith.constant 0 : i32
    return %c0_i32, %c0_i32_0 : i32, i32
  }
  func.func @transform_5(%arg0: i32, %arg1: i32) -> (i32, i32) {
    %c0_i32 = arith.constant 0 : i32
    %c0_i32_0 = arith.constant 0 : i32
    %c0_i32_1 = arith.constant 0 : i32
    return %c0_i32, %c0_i32_0 : i32, i32
  }
  func.func @transform_6(%arg0: i32, %arg1: i32) -> (i32, i32) {
    %c0_i32 = arith.constant 0 : i32
    %c0_i32_0 = arith.constant 0 : i32
    %c0_i32_1 = arith.constant 0 : i32
    return %c0_i32, %c0_i32_0 : i32, i32
  }
  func.func @transform_7(%arg0: i32, %arg1: i32) -> (i32, i32) {
    %c0_i32 = arith.constant 0 : i32
    %c0_i32_0 = arith.constant 0 : i32
    return %arg0, %c0_i32 : i32, i32
  }
}

</mosaic_0001>

<llo_original>
// kernel: classifier_forward.1
$region0: #{classifier_forward.1}
  #allocation0 [shape = 'u32[]', space=smem, size = 0x4, offset = 0x4, fixed_abs, tag = 'smem constant byte address 0x4 - core index']
  #allocation1 [shape = 'u32[144,128]{1,0:T(1,128)}', space=vmem, size = 0x12000, scoped, tag = 'internal scratch']
  #allocation2 [shape = 'f32[8,512]{1,0:T(8,128)}', space=vmem, size = 0x4000, scoped, tag = 'scratch operand']
  %s0 = inlined_call_operand.vmem [shape: bf16[8,1024], index: 0, kind: input, shape index: {}]
  %s1 = inlined_call_operand.hbm [shape: bf16[1024,512], index: 1, kind: input, shape index: {}]
  %s2 = inlined_call_operand.vmem [shape: f32[1,512], index: 2, kind: input, shape index: {}]
  %s3 = inlined_call_operand.hbm [shape: bf16[512,256], index: 3, kind: input, shape index: {}]
  %s4 = inlined_call_operand.vmem [shape: f32[1,256], index: 4, kind: input, shape index: {}]
  %s5 = inlined_call_operand.vmem [shape: bf16[256,128], index: 5, kind: input, shape index: {}]
  %s6 = inlined_call_operand.vmem [shape: f32[1,128], index: 6, kind: input, shape index: {}]
  %s7 = inlined_call_operand.vmem [shape: f32[8,128], index: 7, kind: output, shape index: {}]
  %s8 = sld [smem:[#allocation0]]
  $region77: #{classifier_forward.1} parent=0
    _
  %s10 = ssub.s32 1, %s8
  %s11 = scalar_select 0, %s10, %s8
  $region1: #{classifier_forward.1} parent=0
    #allocation3 [shape = 'u8[1048576]{0}', space=vmem, size = 0x100000, scoped, tag = 'input window, operand 1']
    #allocation4 [shape = 's32[2]{0}', space=sflag, size = 0x8, scoped, tag = 'scoped memory for classifier_forward.1']
    #allocation5 [shape = 'u8[262144]{0}', space=vmem, size = 0x40000, scoped, tag = 'input window, operand 3, single buffered']
    #allocation6 [shape = 's32[1]{0}', space=sflag, size = 0x4, scoped, tag = 'scoped memory for classifier_forward.1']
    %12 = vsyncpa [#allocation4], 0
    %s13 = scalar_lea.sflag [#allocation4], 1
    %14 = vsyncpa %s13, 0
    %15 = vsyncpa [#allocation6], 0
    loop: start=0, step=1, limit=4
    $region2: #{classifier_forward.1} parent=1 // loop_pre_header
      _
    $region3: #{classifier_forward.1} parent=1 // loop_header
      %s17 = sphi 0, %s21
      %p18 = scmp.ge.s32.totalorder %s17, 4
      %s24 = sphi 0, %s36
      %s25 = sphi 0, %s32
      %s26 = sphi 0, %s24
      %s27 = sphi 0, %s25
      %s28 = sphi 0, %s26
      %s29 = sphi 0, %s27
      %s41 = sphi 0, %s43
      %s44 = sphi 0, %s41
      %s45 = sphi 0, %s44
      %s61 = sphi 0, %s45
      %s67 = sphi 0, %s69
      %s70 = sphi 0, %s67
      %s71 = sphi 0, %s70
      %s87 = sphi 0, %s71
      %s91 = sphi 0, %s91
      %s93 = sphi 0, %s91
      %s94 = sphi 0, %s93
      %s108 = sphi 0, %s94
      %s112 = sphi 0, %s112
      %s114 = sphi 0, %s112
      %s115 = sphi 0, %s114
      %s129 = sphi 0, %s115
      %s133 = sphi 0, %s133
      %s135 = sphi 0, %s133
      %s136 = sphi 0, %s135
      %s150 = sphi 0, %s136
      %s154 = sphi 0, %s154
      %s156 = sphi 0, %s154
      %s157 = sphi 0, %s156
      %s171 = sphi 0, %s157
      %s175 = sphi 0, %s175
      %s177 = sphi 0, %s175
      %s178 = sphi 0, %s177
      %s192 = sphi 0, %s178
      %s198 = sphi 0, %s200
      %s201 = sphi 0, %s198
      %s202 = sphi 0, %s201
      %s218 = sphi 0, %s202
    $region4: #{classifier_forward.1} parent=1 // loop_header_branch
      %20 = sbr.rel (%p18) target = $region8
    $region5: #{classifier_forward.1} parent=1 // loop_body
      %s22 = ssub.s32 %s17, 1
      %s23 = ssub.s32 %s17, 2
      %s30 = sadd.s32 1, %s25
      %p31 = scmp.ge.s32.totalorder %s30, 2
      %s32 = scalar_select %p31, 0, %s30
      %s33 = sadd.s32 1, %s24
      %s34 = scalar_select %p31, %s33, %s24
      %p35 = scmp.ge.s32.totalorder %s34, 1
      %s36 = scalar_select %p35, 0, %s34
      %s37 = ssub.s32 %s24, %s36
      %s38 = ssub.s32 %s25, %s32
      %s39 = sor.u32 %s37, %s38
      %p40 = scmp.eq.s32.totalorder %s39, 0
      %s42 = sadd.s32 %s41, 1
      %s43 = scalar_select %p40, %s41, %s42
      %p46 = pneg %p40
      %p47 = scmp.eq.s32.totalorder %s17, 1
      %p48 = por %p46, %p47
      %p49 = scmp.ne.s32.totalorder %s41, %s44
      %p50 = scmp.eq.s32.totalorder %s17, 0
      %p51 = por %p49, %p50
      %p52 = scmp.ne.s32.totalorder %s41, %s44
      %p53 = scmp.eq.s32.totalorder %s22, 1
      %p54 = por %p52, %p53
      %p55 = scmp.ne.s32.totalorder %s44, %s45
      %p56 = scmp.eq.s32.totalorder %s22, 0
      %p57 = por %p55, %p56
      %p58 = scmp.ne.s32.totalorder %s44, %s45
      %p59 = scmp.eq.s32.totalorder %s23, 1
      %p60 = por %p58, %p59
      %p62 = scmp.ne.s32.totalorder %s45, %s61
      %p63 = scmp.eq.s32.totalorder %s23, 0
      %p64 = por %p62, %p63
      %s65 = ssub.s32 %s25, %s32
      %p66 = scmp.eq.s32.totalorder %s65, 0
      %s68 = sadd.s32 %s67, 1
      %s69 = scalar_select %p66, %s67, %s68
      %p72 = pneg %p66
      %p73 = scmp.eq.s32.totalorder %s17, 1
      %p74 = por %p72, %p73
      %p75 = scmp.ne.s32.totalorder %s67, %s70
      %p76 = scmp.eq.s32.totalorder %s17, 0
      %p77 = por %p75, %p76
      %p78 = scmp.ne.s32.totalorder %s67, %s70
      %p79 = scmp.eq.s32.totalorder %s22, 1
      %p80 = por %p78, %p79
      %p81 = scmp.ne.s32.totalorder %s70, %s71
      %p82 = scmp.eq.s32.totalorder %s22, 0
      %p83 = por %p81, %p82
      %p84 = scmp.ne.s32.totalorder %s70, %s71
      %p85 = scmp.eq.s32.totalorder %s23, 1
      %p86 = por %p84, %p85
      %p88 = scmp.ne.s32.totalorder %s71, %s87
      %p89 = scmp.eq.s32.totalorder %s23, 0
      %p90 = por %p88, %p89
      %s92 = sadd.s32 %s91, 1
      %p95 = scmp.eq.s32.totalorder %s17, 1
      %p96 = scmp.ne.s32.totalorder %s91, %s93
      %p97 = scmp.eq.s32.totalorder %s17, 0
      %p98 = por %p96, %p97
      %p99 = scmp.ne.s32.totalorder %s91, %s93
      %p100 = scmp.eq.s32.totalorder %s22, 1
      %p101 = por %p99, %p100
      %p102 = scmp.ne.s32.totalorder %s93, %s94
      %p103 = scmp.eq.s32.totalorder %s22, 0
      %p104 = por %p102, %p103
      %p105 = scmp.ne.s32.totalorder %s93, %s94
      %p106 = scmp.eq.s32.totalorder %s23, 1
      %p107 = por %p105, %p106
      %p109 = scmp.ne.s32.totalorder %s94, %s108
      %p110 = scmp.eq.s32.totalorder %s23, 0
      %p111 = por %p109, %p110
      %s113 = sadd.s32 %s112, 1
      %p116 = scmp.eq.s32.totalorder %s17, 1
      %p117 = scmp.ne.s32.totalorder %s112, %s114
      %p118 = scmp.eq.s32.totalorder %s17, 0
      %p119 = por %p117, %p118
      %p120 = scmp.ne.s32.totalorder %s112, %s114
      %p121 = scmp.eq.s32.totalorder %s22, 1
      %p122 = por %p120, %p121
      %p123 = scmp.ne.s32.totalorder %s114, %s115
      %p124 = scmp.eq.s32.totalorder %s22, 0
      %p125 = por %p123, %p124
      %p126 = scmp.ne.s32.totalorder %s114, %s115
      %p127 = scmp.eq.s32.totalorder %s23, 1
      %p128 = por %p126, %p127
      %p130 = scmp.ne.s32.totalorder %s115, %s129
      %p131 = scmp.eq.s32.totalorder %s23, 0
      %p132 = por %p130, %p131
      %s134 = sadd.s32 %s133, 1
      %p137 = scmp.eq.s32.totalorder %s17, 1
      %p138 = scmp.ne.s32.totalorder %s133, %s135
      %p139 = scmp.eq.s32.totalorder %s17, 0
      %p140 = por %p138, %p139
      %p141 = scmp.ne.s32.totalorder %s133, %s135
      %p142 = scmp.eq.s32.totalorder %s22, 1
      %p143 = por %p141, %p142
      %p144 = scmp.ne.s32.totalorder %s135, %s136
      %p145 = scmp.eq.s32.totalorder %s22, 0
      %p146 = por %p144, %p145
      %p147 = scmp.ne.s32.totalorder %s135, %s136
      %p148 = scmp.eq.s32.totalorder %s23, 1
      %p149 = por %p147, %p148
      %p151 = scmp.ne.s32.totalorder %s136, %s150
      %p152 = scmp.eq.s32.totalorder %s23, 0
      %p153 = por %p151, %p152
      %s155 = sadd.s32 %s154, 1
      %p158 = scmp.eq.s32.totalorder %s17, 1
      %p159 = scmp.ne.s32.totalorder %s154, %s156
      %p160 = scmp.eq.s32.totalorder %s17, 0
      %p161 = por %p159, %p160
      %p162 = scmp.ne.s32.totalorder %s154, %s156
      %p163 = scmp.eq.s32.totalorder %s22, 1
      %p164 = por %p162, %p163
      %p165 = scmp.ne.s32.totalorder %s156, %s157
      %p166 = scmp.eq.s32.totalorder %s22, 0
      %p167 = por %p165, %p166
      %p168 = scmp.ne.s32.totalorder %s156, %s157
      %p169 = scmp.eq.s32.totalorder %s23, 1
      %p170 = por %p168, %p169
      %p172 = scmp.ne.s32.totalorder %s157, %s171
      %p173 = scmp.eq.s32.totalorder %s23, 0
      %p174 = por %p172, %p173
      %s176 = sadd.s32 %s175, 1
      %p179 = scmp.eq.s32.totalorder %s17, 1
      %p180 = scmp.ne.s32.totalorder %s175, %s177
      %p181 = scmp.eq.s32.totalorder %s17, 0
      %p182 = por %p180, %p181
      %p183 = scmp.ne.s32.totalorder %s175, %s177
      %p184 = scmp.eq.s32.totalorder %s22, 1
      %p185 = por %p183, %p184
      %p186 = scmp.ne.s32.totalorder %s177, %s178
      %p187 = scmp.eq.s32.totalorder %s22, 0
      %p188 = por %p186, %p187
      %p189 = scmp.ne.s32.totalorder %s177, %s178
      %p190 = scmp.eq.s32.totalorder %s23, 1
      %p191 = por %p189, %p190
      %p193 = scmp.ne.s32.totalorder %s178, %s192
      %p194 = scmp.eq.s32.totalorder %s23, 0
      %p195 = por %p193, %p194
      %s196 = ssub.s32 %s24, %s36
      %p197 = scmp.eq.s32.totalorder %s196, 0
      %s199 = sadd.s32 %s198, 1
      %s200 = scalar_select %p197, %s198, %s199
      %p203 = pneg %p197
      %p204 = scmp.eq.s32.totalorder %s17, 1
      %p205 = por %p203, %p204
      %p206 = scmp.ne.s32.totalorder %s198, %s201
      %p207 = scmp.eq.s32.totalorder %s17, 0
      %p208 = por %p206, %p207
      %p209 = scmp.ne.s32.totalorder %s198, %s201
      %p210 = scmp.eq.s32.totalorder %s22, 1
      %p211 = por %p209, %p210
      %p212 = scmp.ne.s32.totalorder %s201, %s202
      %p213 = scmp.eq.s32.totalorder %s22, 0
      %p214 = por %p212, %p213
      %p215 = scmp.ne.s32.totalorder %s201, %s202
      %p216 = scmp.eq.s32.totalorder %s23, 1
      %p217 = por %p215, %p216
      %p219 = scmp.ne.s32.totalorder %s202, %s218
      %p220 = scmp.eq.s32.totalorder %s23, 0
      %p221 = por %p219, %p220
      %p222 = scmp.le.s32.totalorder 1, %s17
      %p223 = scmp.lt.s32.totalorder %s17, 3
      %p224 = pnand %p222, %p223
      %p225 = pneg %p224
      // Predicated region
      $region9: #{classifier_forward.1} parent=5 // pred_check
        _
      $region10: #{classifier_forward.1} parent=5 // pred_check_branch
        %227 = sbr.rel (%p224) target = $region12
      $region11: #{classifier_forward.1} parent=5 // pred_region
        %s228 = ssub.s32 %s17, 1
        // Predicated region
        $region13: #{classifier_forward.1} parent=11 // pred_check
          %p229 = pneg %p104
        $region14: #{classifier_forward.1} parent=11 // pred_check_branch
          %231 = sbr.rel (%p229) target = $region16
        $region15: #{classifier_forward.1} parent=11 // pred_region
          _
        $region16: #{classifier_forward.1} parent=11 // pred_fallthru
          _
        // Predicated region
        $region17: #{classifier_forward.1} parent=11 // pred_check
          %p232 = pneg %p125
        $region18: #{classifier_forward.1} parent=11 // pred_check_branch
          %234 = sbr.rel (%p232) target = $region20
        $region19: #{classifier_forward.1} parent=11 // pred_region
          %s236 = ssub.s32 8192, 8192
          %237 = vsyncadd [#allocation6], %s236
          %s238 = sshll.u32 [#allocation5], 4
          %s239 = int_to_ptr.vmem [resolvable:$true] %s238
          %244 = dma.hbm_to_vmem [thread:$0]  %s3, 8192, %s239, [#allocation6], 128, 128, 8
        $region20: #{classifier_forward.1} parent=11 // pred_fallthru
          _
        // Predicated region
        $region21: #{classifier_forward.1} parent=11 // pred_check
          %p245 = pneg %p146
        $region22: #{classifier_forward.1} parent=11 // pred_check_branch
          %247 = sbr.rel (%p245) target = $region24
        $region23: #{classifier_forward.1} parent=11 // pred_region
          _
        $region24: #{classifier_forward.1} parent=11 // pred_fallthru
          _
        // Predicated region
        $region25: #{classifier_forward.1} parent=11 // pred_check
          %p248 = pneg %p167
        $region26: #{classifier_forward.1} parent=11 // pred_check_branch
          %250 = sbr.rel (%p248) target = $region28
        $region27: #{classifier_forward.1} parent=11 // pred_region
          _
        $region28: #{classifier_forward.1} parent=11 // pred_fallthru
          _
        // Predicated region
        $region29: #{classifier_forward.1} parent=11 // pred_check
          %p251 = pneg %p188
        $region30: #{classifier_forward.1} parent=11 // pred_check_branch
          %253 = sbr.rel (%p251) target = $region32
        $region31: #{classifier_forward.1} parent=11 // pred_region
          _
        $region32: #{classifier_forward.1} parent=11 // pred_fallthru
          _
      $region12: #{classifier_forward.1} parent=5 // pred_fallthru
        _
      %p254 = scmp.lt.s32.totalorder %s17, 2
      // Predicated region
      $region33: #{classifier_forward.1} parent=5 // pred_check
        %p255 = pneg %p254
      $region34: #{classifier_forward.1} parent=5 // pred_check_branch
        %257 = sbr.rel (%p255) target = $region36
      $region35: #{classifier_forward.1} parent=5 // pred_region
        // Predicated region
        $region37: #{classifier_forward.1} parent=35 // pred_check
          %p258 = pneg %p51
        $region38: #{classifier_forward.1} parent=35 // pred_check_branch
          %260 = sbr.rel (%p258) target = $region40
        $region39: #{classifier_forward.1} parent=35 // pred_region
          %s261 = smul.u32 4, %s25
          %p262 = scmp.lt.s32.totalorder %s24, 0
          %s263 = scalar_select %p262, %s24, 0
          %p264 = scmp.lt.s32.totalorder %s261, 7
          %s265 = scalar_select %p264, %s261, 7
          %s266 = smul.addr %s263, 8
          %s267 = sadd.s32 %s265, %s266
          %s268 = smul.addr %s267, 4
          %s269 = scalar_lea.vmem %s0, %s268
          %s270 = smul.u32 4, %s25
        $region40: #{classifier_forward.1} parent=35 // pred_fallthru
          _
        // Predicated region
        $region41: #{classifier_forward.1} parent=35 // pred_check
          %p271 = pneg %p77
        $region42: #{classifier_forward.1} parent=35 // pred_check_branch
          %273 = sbr.rel (%p271) target = $region44
        $region43: #{classifier_forward.1} parent=35 // pred_region
          %s274 = sand.u32 %s67, 1
          %s275 = scalar_lea.sflag [#allocation4], %s274
          %s276 = sand.u32 %s67, 1
          %s277 = smul.addr %s276, 1024
          %s278 = scalar_lea.vmem [#allocation3], %s277
          %s279 = smul.u32 64, %s25
          %s281 = ssub.s32 16384, 16384
          %282 = vsyncadd %s275, %s281
          %s283 = smul.addr %s279, 4
          %s284 = smul.addr %s283, 64
          %s285 = scalar_lea.hbm %s1, %s284
          %s286 = sshll.u32 %s278, 4
          %s287 = int_to_ptr.vmem [resolvable:$true] %s286
          %292 = dma.hbm_to_vmem [thread:$0]  %s285, 16384, %s287, %s275, 256, 256, 16
        $region44: #{classifier_forward.1} parent=35 // pred_fallthru
          _
      $region36: #{classifier_forward.1} parent=5 // pred_fallthru
        _
      %p293 = scmp.le.s32.totalorder 1, %s17
      %p294 = scmp.lt.s32.totalorder %s17, 3
      %p295 = pnand %p293, %p294
      %p296 = pneg %p295
      // Predicated region
      $region45: #{classifier_forward.1} parent=5 // pred_check
        _
      $region46: #{classifier_forward.1} parent=5 // pred_check_branch
        %298 = sbr.rel (%p295) target = $region48
      $region47: #{classifier_forward.1} parent=5 // pred_region
        %s299 = ssub.s32 %s17, 1
        %s300 = sand.u32 %s70, 1
        %s301 = scalar_lea.sflag [#allocation4], %s300
        %s302 = sand.u32 %s70, 1
        %s303 = smul.addr %s302, 1024
        %s304 = scalar_lea.vmem [#allocation3], %s303
        // Predicated region
        $region49: #{classifier_forward.1} parent=47 // pred_check
          %p305 = pneg %p83
        $region50: #{classifier_forward.1} parent=47 // pred_check_branch
          %307 = sbr.rel (%p305) target = $region52
        $region51: #{classifier_forward.1} parent=47 // pred_region
          %308 = dma.done %s301, 16384
        $region52: #{classifier_forward.1} parent=47 // pred_fallthru
          _
        // Predicated region
        $region53: #{classifier_forward.1} parent=47 // pred_check
          %p309 = pneg %p125
        $region54: #{classifier_forward.1} parent=47 // pred_check_branch
          %311 = sbr.rel (%p309) target = $region56
        $region55: #{classifier_forward.1} parent=47 // pred_region
          %312 = dma.done [#allocation6], 8192
        $region56: #{classifier_forward.1} parent=47 // pred_fallthru
          _
        %s313 = smul.u32 4, %s27
        %p314 = scmp.lt.s32.totalorder %s26, 0
        %s315 = scalar_select %p314, %s26, 0
        %p316 = scmp.lt.s32.totalorder %s313, 7
        %s317 = scalar_select %p316, %s313, 7
        %s318 = smul.addr %s315, 8
        %s319 = sadd.s32 %s317, %s318
        %s320 = smul.addr %s319, 4
        %s321 = scalar_lea.vmem %s0, %s320
        %p322 = pneg %p57
        %p323 = pneg %p54
        %s324 = sand.u32 %s70, 1
        %s325 = scalar_lea.sflag [#allocation4], %s324
        %s326 = sand.u32 %s70, 1
        %s327 = smul.addr %s326, 1024
        %s328 = scalar_lea.vmem [#allocation3], %s327
        %p329 = pneg %p83
        %p330 = pneg %p80
        %p331 = pneg %p104
        %p332 = pneg %p101
        %p333 = pneg %p125
        %p334 = pneg %p122
        %p335 = pneg %p146
        %p336 = pneg %p143
        %p337 = pneg %p167
        %p338 = pneg %p164
        %p339 = pneg %p188
        %p340 = pneg %p185
        %p341 = pneg %p214
        %p342 = pneg %p211
        %p343 = scmp.lt.s32.totalorder %s26, 0
        %s344 = scalar_select %p343, %s26, 0
        %s345 = smul.addr %s344, 8
        %s346 = scalar_lea.vmem %s7, %s345
        %s347 = smul.u32 4, %s27
        %p348 = scmp.lt.s32.totalorder %s26, 0
        %s349 = scalar_select %p348, %s26, 0
        %p350 = scmp.lt.s32.totalorder %s347, 7
        %s351 = scalar_select %p350, %s347, 7
        %s352 = smul.addr %s349, 8
        %s353 = sadd.s32 %s351, %s352
        %s354 = smul.addr %s353, 4
        %s355 = scalar_lea.vmem %s0, %s354
        %s356 = smul.u32 4, %s27
        %s357 = smul.u32 64, %s27
        %p358 = scmp.lt.s32.totalorder %s26, 0
        %s359 = scalar_select %p358, %s26, 0
        %s360 = smul.addr %s359, 8
        %s361 = scalar_lea.vmem %s7, %s360
        %p363 = scmp.eq.s32.totalorder %s27, 0
        // Predicated region
        $region57: #{classifier_forward.1} parent=47 // pred_check
          %p364 = pneg %p363
        $region58: #{classifier_forward.1} parent=47 // pred_check_branch
          %366 = sbr.rel (%p364) target = $region60
        $region59: #{classifier_forward.1} parent=47 // pred_region
          %367 = vst [vmem:[#allocation2] sm:$0xff] 0.0
          %368 = vst [vmem:[#allocation2 + $0x8] sm:$0xff] 0.0
          %369 = vst [vmem:[#allocation2 + $0x10] sm:$0xff] 0.0
          %370 = vst [vmem:[#allocation2 + $0x18] sm:$0xff] 0.0
        $region60: #{classifier_forward.1} parent=47 // pred_fallthru
          _
        %v371 = vld [vmem:[#allocation2] sm:$0xff]
        %v372 = vld [vmem:[#allocation2 + $0x8] sm:$0xff]
        %v373 = vld [vmem:[#allocation2 + $0x10] sm:$0xff]
        %v374 = vld [vmem:[#allocation2 + $0x18] sm:$0xff]
        %v375 = vld [vmem:[%s355] sm:$0xff]
        %v376 = vld [vmem:[%s355 + $0x8] sm:$0xff]
        %v377 = vld [vmem:[%s304] sm:$0xff]
        %v378 = vld [vmem:[%s304 + $0x8] sm:$0xff]
        %v379 = vld [vmem:[%s304 + $0x10] sm:$0xff]
        %v380 = vld [vmem:[%s304 + $0x18] sm:$0xff]
        %v381 = vld [vmem:[%s304 + $0x20] sm:$0xff]
        %v382 = vld [vmem:[%s304 + $0x28] sm:$0xff]
        %v383 = vld [vmem:[%s304 + $0x30] sm:$0xff]
        %v384 = vld [vmem:[%s304 + $0x38] sm:$0xff]
        %v385 = vld [vmem:[%s304 + $0x40] sm:$0xff]
        %v386 = vld [vmem:[%s304 + $0x48] sm:$0xff]
        %v387 = vld [vmem:[%s304 + $0x50] sm:$0xff]
        %v388 = vld [vmem:[%s304 + $0x58] sm:$0xff]
        %v389 = vld [vmem:[%s304 + $0x60] sm:$0xff]
        %v390 = vld [vmem:[%s304 + $0x68] sm:$0xff]
        %v391 = vld [vmem:[%s304 + $0x70] sm:$0xff]
        %v392 = vld [vmem:[%s304 + $0x78] sm:$0xff]
        %v393 = vld [vmem:[%s304 + $0x80] sm:$0xff]
        %v394 = vld [vmem:[%s304 + $0x88] sm:$0xff]
        %v395 = vld [vmem:[%s304 + $0x90] sm:$0xff]
        %v396 = vld [vmem:[%s304 + $0x98] sm:$0xff]
        %v397 = vld [vmem:[%s304 + $0xa0] sm:$0xff]
        %v398 = vld [vmem:[%s304 + $0xa8] sm:$0xff]
        %v399 = vld [vmem:[%s304 + $0xb0] sm:$0xff]
        %v400 = vld [vmem:[%s304 + $0xb8] sm:$0xff]
        %v401 = vld [vmem:[%s304 + $0xc0] sm:$0xff]
        %v402 = vld [vmem:[%s304 + $0xc8] sm:$0xff]
        %v403 = vld [vmem:[%s304 + $0xd0] sm:$0xff]
        %v404 = vld [vmem:[%s304 + $0xd8] sm:$0xff]
        %v405 = vld [vmem:[%s304 + $0xe0] sm:$0xff]
        %v406 = vld [vmem:[%s304 + $0xe8] sm:$0xff]
        %v407 = vld [vmem:[%s304 + $0xf0] sm:$0xff]
        %v408 = vld [vmem:[%s304 + $0xf8] sm:$0xff]
        %v409 = vld [vmem:[%s304 + $0x100] sm:$0xff]
        %v410 = vld [vmem:[%s304 + $0x108] sm:$0xff]
        %v411 = vld [vmem:[%s304 + $0x110] sm:$0xff]
        %v412 = vld [vmem:[%s304 + $0x118] sm:$0xff]
        %v413 = vld [vmem:[%s304 + $0x120] sm:$0xff]
        %v414 = vld [vmem:[%s304 + $0x128] sm:$0xff]
        %v415 = vld [vmem:[%s304 + $0x130] sm:$0xff]
        %v416 = vld [vmem:[%s304 + $0x138] sm:$0xff]
        %v417 = vld [vmem:[%s304 + $0x140] sm:$0xff]
        %v418 = vld [vmem:[%s304 + $0x148] sm:$0xff]
        %v419 = vld [vmem:[%s304 + $0x150] sm:$0xff]
        %v420 = vld [vmem:[%s304 + $0x158] sm:$0xff]
        %v421 = vld [vmem:[%s304 + $0x160] sm:$0xff]
        %v422 = vld [vmem:[%s304 + $0x168] sm:$0xff]
        %v423 = vld [vmem:[%s304 + $0x170] sm:$0xff]
        %v424 = vld [vmem:[%s304 + $0x178] sm:$0xff]
        %v425 = vld [vmem:[%s304 + $0x180] sm:$0xff]
        %v426 = vld [vmem:[%s304 + $0x188] sm:$0xff]
        %v427 = vld [vmem:[%s304 + $0x190] sm:$0xff]
        %v428 = vld [vmem:[%s304 + $0x198] sm:$0xff]
        %v429 = vld [vmem:[%s304 + $0x1a0] sm:$0xff]
        %v430 = vld [vmem:[%s304 + $0x1a8] sm:$0xff]
        %v431 = vld [vmem:[%s304 + $0x1b0] sm:$0xff]
        %v432 = vld [vmem:[%s304 + $0x1b8] sm:$0xff]
        %v433 = vld [vmem:[%s304 + $0x1c0] sm:$0xff]
        %v434 = vld [vmem:[%s304 + $0x1c8] sm:$0xff]
        %v435 = vld [vmem:[%s304 + $0x1d0] sm:$0xff]
        %v436 = vld [vmem:[%s304 + $0x1d8] sm:$0xff]
        %v437 = vld [vmem:[%s304 + $0x1e0] sm:$0xff]
        %v438 = vld [vmem:[%s304 + $0x1e8] sm:$0xff]
        %v439 = vld [vmem:[%s304 + $0x1f0] sm:$0xff]
        %v440 = vld [vmem:[%s304 + $0x1f8] sm:$0xff]
        %v441 = vld [vmem:[%s304 + $0x200] sm:$0xff]
        %v442 = vld [vmem:[%s304 + $0x208] sm:$0xff]
        %v443 = vld [vmem:[%s304 + $0x210] sm:$0xff]
        %v444 = vld [vmem:[%s304 + $0x218] sm:$0xff]
        %v445 = vld [vmem:[%s304 + $0x220] sm:$0xff]
        %v446 = vld [vmem:[%s304 + $0x228] sm:$0xff]
        %v447 = vld [vmem:[%s304 + $0x230] sm:$0xff]
        %v448 = vld [vmem:[%s304 + $0x238] sm:$0xff]
        %v449 = vld [vmem:[%s304 + $0x240] sm:$0xff]
        %v450 = vld [vmem:[%s304 + $0x248] sm:$0xff]
        %v451 = vld [vmem:[%s304 + $0x250] sm:$0xff]
        %v452 = vld [vmem:[%s304 + $0x258] sm:$0xff]
        %v453 = vld [vmem:[%s304 + $0x260] sm:$0xff]
        %v454 = vld [vmem:[%s304 + $0x268] sm:$0xff]
        %v455 = vld [vmem:[%s304 + $0x270] sm:$0xff]
        %v456 = vld [vmem:[%s304 + $0x278] sm:$0xff]
        %v457 = vld [vmem:[%s304 + $0x280] sm:$0xff]
        %v458 = vld [vmem:[%s304 + $0x288] sm:$0xff]
        %v459 = vld [vmem:[%s304 + $0x290] sm:$0xff]
        %v460 = vld [vmem:[%s304 + $0x298] sm:$0xff]
        %v461 = vld [vmem:[%s304 + $0x2a0] sm:$0xff]
        %v462 = vld [vmem:[%s304 + $0x2a8] sm:$0xff]
        %v463 = vld [vmem:[%s304 + $0x2b0] sm:$0xff]
        %v464 = vld [vmem:[%s304 + $0x2b8] sm:$0xff]
        %v465 = vld [vmem:[%s304 + $0x2c0] sm:$0xff]
        %v466 = vld [vmem:[%s304 + $0x2c8] sm:$0xff]
        %v467 = vld [vmem:[%s304 + $0x2d0] sm:$0xff]
        %v468 = vld [vmem:[%s304 + $0x2d8] sm:$0xff]
        %v469 = vld [vmem:[%s304 + $0x2e0] sm:$0xff]
        %v470 = vld [vmem:[%s304 + $0x2e8] sm:$0xff]
        %v471 = vld [vmem:[%s304 + $0x2f0] sm:$0xff]
        %v472 = vld [vmem:[%s304 + $0x2f8] sm:$0xff]
        %v473 = vld [vmem:[%s304 + $0x300] sm:$0xff]
        %v474 = vld [vmem:[%s304 + $0x308] sm:$0xff]
        %v475 = vld [vmem:[%s304 + $0x310] sm:$0xff]
        %v476 = vld [vmem:[%s304 + $0x318] sm:$0xff]
        %v477 = vld [vmem:[%s304 + $0x320] sm:$0xff]
        %v478 = vld [vmem:[%s304 + $0x328] sm:$0xff]
        %v479 = vld [vmem:[%s304 + $0x330] sm:$0xff]
        %v480 = vld [vmem:[%s304 + $0x338] sm:$0xff]
        %v481 = vld [vmem:[%s304 + $0x340] sm:$0xff]
        %v482 = vld [vmem:[%s304 + $0x348] sm:$0xff]
        %v483 = vld [vmem:[%s304 + $0x350] sm:$0xff]
        %v484 = vld [vmem:[%s304 + $0x358] sm:$0xff]
        %v485 = vld [vmem:[%s304 + $0x360] sm:$0xff]
        %v486 = vld [vmem:[%s304 + $0x368] sm:$0xff]
        %v487 = vld [vmem:[%s304 + $0x370] sm:$0xff]
        %v488 = vld [vmem:[%s304 + $0x378] sm:$0xff]
        %v489 = vld [vmem:[%s304 + $0x380] sm:$0xff]
        %v490 = vld [vmem:[%s304 + $0x388] sm:$0xff]
        %v491 = vld [vmem:[%s304 + $0x390] sm:$0xff]
        %v492 = vld [vmem:[%s304 + $0x398] sm:$0xff]
        %v493 = vld [vmem:[%s304 + $0x3a0] sm:$0xff]
        %v494 = vld [vmem:[%s304 + $0x3a8] sm:$0xff]
        %v495 = vld [vmem:[%s304 + $0x3b0] sm:$0xff]
        %v496 = vld [vmem:[%s304 + $0x3b8] sm:$0xff]
        %v497 = vld [vmem:[%s304 + $0x3c0] sm:$0xff]
        %v498 = vld [vmem:[%s304 + $0x3c8] sm:$0xff]
        %v499 = vld [vmem:[%s304 + $0x3d0] sm:$0xff]
        %v500 = vld [vmem:[%s304 + $0x3d8] sm:$0xff]
        %v501 = vld [vmem:[%s304 + $0x3e0] sm:$0xff]
        %v502 = vld [vmem:[%s304 + $0x3e8] sm:$0xff]
        %v503 = vld [vmem:[%s304 + $0x3f0] sm:$0xff]
        %v504 = vld [vmem:[%s304 + $0x3f8] sm:$0xff]
        %v507 = vunpack.c.l.b16 %v375
        %v508 = vunpack.c.h.b16 %v375
        %v509 = vunpack.c.l.b16 %v376
        %v510 = vunpack.c.h.b16 %v376
        %v511 = vpack.c.b16 %v507, %v507
        %v512 = vpack.c.b16 %v508, %v508
        %v513 = vpack.c.b16 %v509, %v509
        %v514 = vpack.c.b16 %v510, %v510
        %v647 = vunpack.c.l.b16 %v377
        %v648 = vunpack.c.h.b16 %v377
        %v649 = vunpack.c.l.b16 %v378
        %v650 = vunpack.c.h.b16 %v378
        %v651 = vunpack.c.l.b16 %v379
        %v652 = vunpack.c.h.b16 %v379
        %v653 = vunpack.c.l.b16 %v380
        %v654 = vunpack.c.h.b16 %v380
        %v655 = vunpack.c.l.b16 %v381
        %v656 = vunpack.c.h.b16 %v381
        %v657 = vunpack.c.l.b16 %v382
        %v658 = vunpack.c.h.b16 %v382
        %v659 = vunpack.c.l.b16 %v383
        %v660 = vunpack.c.h.b16 %v383
        %v661 = vunpack.c.l.b16 %v384
        %v662 = vunpack.c.h.b16 %v384
        %v663 = vunpack.c.l.b16 %v385
        %v664 = vunpack.c.h.b16 %v385
        %v665 = vunpack.c.l.b16 %v386
        %v666 = vunpack.c.h.b16 %v386
        %v667 = vunpack.c.l.b16 %v387
        %v668 = vunpack.c.h.b16 %v387
        %v669 = vunpack.c.l.b16 %v388
        %v670 = vunpack.c.h.b16 %v388
        %v671 = vunpack.c.l.b16 %v389
        %v672 = vunpack.c.h.b16 %v389
        %v673 = vunpack.c.l.b16 %v390
        %v674 = vunpack.c.h.b16 %v390
        %v675 = vunpack.c.l.b16 %v391
        %v676 = vunpack.c.h.b16 %v391
        %v677 = vunpack.c.l.b16 %v392
        %v678 = vunpack.c.h.b16 %v392
        %v679 = vunpack.c.l.b16 %v393
        %v680 = vunpack.c.h.b16 %v393
        %v681 = vunpack.c.l.b16 %v394
        %v682 = vunpack.c.h.b16 %v394
        %v683 = vunpack.c.l.b16 %v395
        %v684 = vunpack.c.h.b16 %v395
        %v685 = vunpack.c.l.b16 %v396
        %v686 = vunpack.c.h.b16 %v396
        %v687 = vunpack.c.l.b16 %v397
        %v688 = vunpack.c.h.b16 %v397
        %v689 = vunpack.c.l.b16 %v398
        %v690 = vunpack.c.h.b16 %v398
        %v691 = vunpack.c.l.b16 %v399
        %v692 = vunpack.c.h.b16 %v399
        %v693 = vunpack.c.l.b16 %v400
        %v694 = vunpack.c.h.b16 %v400
        %v695 = vunpack.c.l.b16 %v401
        %v696 = vunpack.c.h.b16 %v401
        %v697 = vunpack.c.l.b16 %v402
        %v698 = vunpack.c.h.b16 %v402
        %v699 = vunpack.c.l.b16 %v403
        %v700 = vunpack.c.h.b16 %v403
        %v701 = vunpack.c.l.b16 %v404
        %v702 = vunpack.c.h.b16 %v404
        %v703 = vunpack.c.l.b16 %v405
        %v704 = vunpack.c.h.b16 %v405
        %v705 = vunpack.c.l.b16 %v406
        %v706 = vunpack.c.h.b16 %v406
        %v707 = vunpack.c.l.b16 %v407
        %v708 = vunpack.c.h.b16 %v407
        %v709 = vunpack.c.l.b16 %v408
        %v710 = vunpack.c.h.b16 %v408
        %v711 = vunpack.c.l.b16 %v409
        %v712 = vunpack.c.h.b16 %v409
        %v713 = vunpack.c.l.b16 %v410
        %v714 = vunpack.c.h.b16 %v410
        %v715 = vunpack.c.l.b16 %v411
        %v716 = vunpack.c.h.b16 %v411
        %v717 = vunpack.c.l.b16 %v412
        %v718 = vunpack.c.h.b16 %v412
        %v719 = vunpack.c.l.b16 %v413
        %v720 = vunpack.c.h.b16 %v413
        %v721 = vunpack.c.l.b16 %v414
        %v722 = vunpack.c.h.b16 %v414
        %v723 = vunpack.c.l.b16 %v415
        %v724 = vunpack.c.h.b16 %v415
        %v725 = vunpack.c.l.b16 %v416
        %v726 = vunpack.c.h.b16 %v416
        %v727 = vunpack.c.l.b16 %v417
        %v728 = vunpack.c.h.b16 %v417
        %v729 = vunpack.c.l.b16 %v418
        %v730 = vunpack.c.h.b16 %v418
        %v731 = vunpack.c.l.b16 %v419
        %v732 = vunpack.c.h.b16 %v419
        %v733 = vunpack.c.l.b16 %v420
        %v734 = vunpack.c.h.b16 %v420
        %v735 = vunpack.c.l.b16 %v421
        %v736 = vunpack.c.h.b16 %v421
        %v737 = vunpack.c.l.b16 %v422
        %v738 = vunpack.c.h.b16 %v422
        %v739 = vunpack.c.l.b16 %v423
        %v740 = vunpack.c.h.b16 %v423
        %v741 = vunpack.c.l.b16 %v424
        %v742 = vunpack.c.h.b16 %v424
        %v743 = vunpack.c.l.b16 %v425
        %v744 = vunpack.c.h.b16 %v425
        %v745 = vunpack.c.l.b16 %v426
        %v746 = vunpack.c.h.b16 %v426
        %v747 = vunpack.c.l.b16 %v427
        %v748 = vunpack.c.h.b16 %v427
        %v749 = vunpack.c.l.b16 %v428
        %v750 = vunpack.c.h.b16 %v428
        %v751 = vunpack.c.l.b16 %v429
        %v752 = vunpack.c.h.b16 %v429
        %v753 = vunpack.c.l.b16 %v430
        %v754 = vunpack.c.h.b16 %v430
        %v755 = vunpack.c.l.b16 %v431
        %v756 = vunpack.c.h.b16 %v431
        %v757 = vunpack.c.l.b16 %v432
        %v758 = vunpack.c.h.b16 %v432
        %v759 = vunpack.c.l.b16 %v433
        %v760 = vunpack.c.h.b16 %v433
        %v761 = vunpack.c.l.b16 %v434
        %v762 = vunpack.c.h.b16 %v434
        %v763 = vunpack.c.l.b16 %v435
        %v764 = vunpack.c.h.b16 %v435
        %v765 = vunpack.c.l.b16 %v436
        %v766 = vunpack.c.h.b16 %v436
        %v767 = vunpack.c.l.b16 %v437
        %v768 = vunpack.c.h.b16 %v437
        %v769 = vunpack.c.l.b16 %v438
        %v770 = vunpack.c.h.b16 %v438
        %v771 = vunpack.c.l.b16 %v439
        %v772 = vunpack.c.h.b16 %v439
        %v773 = vunpack.c.l.b16 %v440
        %v774 = vunpack.c.h.b16 %v440
        %v775 = vunpack.c.l.b16 %v441
        %v776 = vunpack.c.h.b16 %v441
        %v777 = vunpack.c.l.b16 %v442
        %v778 = vunpack.c.h.b16 %v442
        %v779 = vunpack.c.l.b16 %v443
        %v780 = vunpack.c.h.b16 %v443
        %v781 = vunpack.c.l.b16 %v444
        %v782 = vunpack.c.h.b16 %v444
        %v783 = vunpack.c.l.b16 %v445
        %v784 = vunpack.c.h.b16 %v445
        %v785 = vunpack.c.l.b16 %v446
        %v786 = vunpack.c.h.b16 %v446
        %v787 = vunpack.c.l.b16 %v447
        %v788 = vunpack.c.h.b16 %v447
        %v789 = vunpack.c.l.b16 %v448
        %v790 = vunpack.c.h.b16 %v448
        %v791 = vunpack.c.l.b16 %v449
        %v792 = vunpack.c.h.b16 %v449
        %v793 = vunpack.c.l.b16 %v450
        %v794 = vunpack.c.h.b16 %v450
        %v795 = vunpack.c.l.b16 %v451
        %v796 = vunpack.c.h.b16 %v451
        %v797 = vunpack.c.l.b16 %v452
        %v798 = vunpack.c.h.b16 %v452
        %v799 = vunpack.c.l.b16 %v453
        %v800 = vunpack.c.h.b16 %v453
        %v801 = vunpack.c.l.b16 %v454
        %v802 = vunpack.c.h.b16 %v454
        %v803 = vunpack.c.l.b16 %v455
        %v804 = vunpack.c.h.b16 %v455
        %v805 = vunpack.c.l.b16 %v456
        %v806 = vunpack.c.h.b16 %v456
        %v807 = vunpack.c.l.b16 %v457
        %v808 = vunpack.c.h.b16 %v457
        %v809 = vunpack.c.l.b16 %v458
        %v810 = vunpack.c.h.b16 %v458
        %v811 = vunpack.c.l.b16 %v459
        %v812 = vunpack.c.h.b16 %v459
        %v813 = vunpack.c.l.b16 %v460
        %v814 = vunpack.c.h.b16 %v460
        %v815 = vunpack.c.l.b16 %v461
        %v816 = vunpack.c.h.b16 %v461
        %v817 = vunpack.c.l.b16 %v462
        %v818 = vunpack.c.h.b16 %v462
        %v819 = vunpack.c.l.b16 %v463
        %v820 = vunpack.c.h.b16 %v463
        %v821 = vunpack.c.l.b16 %v464
        %v822 = vunpack.c.h.b16 %v464
        %v823 = vunpack.c.l.b16 %v465
        %v824 = vunpack.c.h.b16 %v465
        %v825 = vunpack.c.l.b16 %v466
        %v826 = vunpack.c.h.b16 %v466
        %v827 = vunpack.c.l.b16 %v467
        %v828 = vunpack.c.h.b16 %v467
        %v829 = vunpack.c.l.b16 %v468
        %v830 = vunpack.c.h.b16 %v468
        %v831 = vunpack.c.l.b16 %v469
        %v832 = vunpack.c.h.b16 %v469
        %v833 = vunpack.c.l.b16 %v470
        %v834 = vunpack.c.h.b16 %v470
        %v835 = vunpack.c.l.b16 %v471
        %v836 = vunpack.c.h.b16 %v471
        %v837 = vunpack.c.l.b16 %v472
        %v838 = vunpack.c.h.b16 %v472
        %v839 = vunpack.c.l.b16 %v473
        %v840 = vunpack.c.h.b16 %v473
        %v841 = vunpack.c.l.b16 %v474
        %v842 = vunpack.c.h.b16 %v474
        %v843 = vunpack.c.l.b16 %v475
        %v844 = vunpack.c.h.b16 %v475
        %v845 = vunpack.c.l.b16 %v476
        %v846 = vunpack.c.h.b16 %v476
        %v847 = vunpack.c.l.b16 %v477
        %v848 = vunpack.c.h.b16 %v477
        %v849 = vunpack.c.l.b16 %v478
        %v850 = vunpack.c.h.b16 %v478
        %v851 = vunpack.c.l.b16 %v479
        %v852 = vunpack.c.h.b16 %v479
        %v853 = vunpack.c.l.b16 %v480
        %v854 = vunpack.c.h.b16 %v480
        %v855 = vunpack.c.l.b16 %v481
        %v856 = vunpack.c.h.b16 %v481
        %v857 = vunpack.c.l.b16 %v482
        %v858 = vunpack.c.h.b16 %v482
        %v859 = vunpack.c.l.b16 %v483
        %v860 = vunpack.c.h.b16 %v483
        %v861 = vunpack.c.l.b16 %v484
        %v862 = vunpack.c.h.b16 %v484
        %v863 = vunpack.c.l.b16 %v485
        %v864 = vunpack.c.h.b16 %v485
        %v865 = vunpack.c.l.b16 %v486
        %v866 = vunpack.c.h.b16 %v486
        %v867 = vunpack.c.l.b16 %v487
        %v868 = vunpack.c.h.b16 %v487
        %v869 = vunpack.c.l.b16 %v488
        %v870 = vunpack.c.h.b16 %v488
        %v871 = vunpack.c.l.b16 %v489
        %v872 = vunpack.c.h.b16 %v489
        %v873 = vunpack.c.l.b16 %v490
        %v874 = vunpack.c.h.b16 %v490
        %v875 = vunpack.c.l.b16 %v491
        %v876 = vunpack.c.h.b16 %v491
        %v877 = vunpack.c.l.b16 %v492
        %v878 = vunpack.c.h.b16 %v492
        %v879 = vunpack.c.l.b16 %v493
        %v880 = vunpack.c.h.b16 %v493
        %v881 = vunpack.c.l.b16 %v494
        %v882 = vunpack.c.h.b16 %v494
        %v883 = vunpack.c.l.b16 %v495
        %v884 = vunpack.c.h.b16 %v495
        %v885 = vunpack.c.l.b16 %v496
        %v886 = vunpack.c.h.b16 %v496
        %v887 = vunpack.c.l.b16 %v497
        %v888 = vunpack.c.h.b16 %v497
        %v889 = vunpack.c.l.b16 %v498
        %v890 = vunpack.c.h.b16 %v498
        %v891 = vunpack.c.l.b16 %v499
        %v892 = vunpack.c.h.b16 %v499
        %v893 = vunpack.c.l.b16 %v500
        %v894 = vunpack.c.h.b16 %v500
        %v895 = vunpack.c.l.b16 %v501
        %v896 = vunpack.c.h.b16 %v501
        %v897 = vunpack.c.l.b16 %v502
        %v898 = vunpack.c.h.b16 %v502
        %v899 = vunpack.c.l.b16 %v503
        %v900 = vunpack.c.h.b16 %v503
        %v901 = vunpack.c.l.b16 %v504
        %v902 = vunpack.c.h.b16 %v504
        %v903 = vpack.c.b16 %v651, %v647
        %v904 = vpack.c.b16 %v652, %v648
        %v905 = vpack.c.b16 %v653, %v649
        %v906 = vpack.c.b16 %v654, %v650
        %v907 = vpack.c.b16 %v659, %v655
        %v908 = vpack.c.b16 %v660, %v656
        %v909 = vpack.c.b16 %v661, %v657
        %v910 = vpack.c.b16 %v662, %v658
        %v911 = vpack.c.b16 %v667, %v663
        %v912 = vpack.c.b16 %v668, %v664
        %v913 = vpack.c.b16 %v669, %v665
        %v914 = vpack.c.b16 %v670, %v666
        %v915 = vpack.c.b16 %v675, %v671
        %v916 = vpack.c.b16 %v676, %v672
        %v917 = vpack.c.b16 %v677, %v673
        %v918 = vpack.c.b16 %v678, %v674
        %v919 = vpack.c.b16 %v683, %v679
        %v920 = vpack.c.b16 %v684, %v680
        %v921 = vpack.c.b16 %v685, %v681
        %v922 = vpack.c.b16 %v686, %v682
        %v923 = vpack.c.b16 %v691, %v687
        %v924 = vpack.c.b16 %v692, %v688
        %v925 = vpack.c.b16 %v693, %v689
        %v926 = vpack.c.b16 %v694, %v690
        %v927 = vpack.c.b16 %v699, %v695
        %v928 = vpack.c.b16 %v700, %v696
        %v929 = vpack.c.b16 %v701, %v697
        %v930 = vpack.c.b16 %v702, %v698
        %v931 = vpack.c.b16 %v707, %v703
        %v932 = vpack.c.b16 %v708, %v704
        %v933 = vpack.c.b16 %v709, %v705
        %v934 = vpack.c.b16 %v710, %v706
        %v935 = vpack.c.b16 %v715, %v711
        %v936 = vpack.c.b16 %v716, %v712
        %v937 = vpack.c.b16 %v717, %v713
        %v938 = vpack.c.b16 %v718, %v714
        %v939 = vpack.c.b16 %v723, %v719
        %v940 = vpack.c.b16 %v724, %v720
        %v941 = vpack.c.b16 %v725, %v721
        %v942 = vpack.c.b16 %v726, %v722
        %v943 = vpack.c.b16 %v731, %v727
        %v944 = vpack.c.b16 %v732, %v728
        %v945 = vpack.c.b16 %v733, %v729
        %v946 = vpack.c.b16 %v734, %v730
        %v947 = vpack.c.b16 %v739, %v735
        %v948 = vpack.c.b16 %v740, %v736
        %v949 = vpack.c.b16 %v741, %v737
        %v950 = vpack.c.b16 %v742, %v738
        %v951 = vpack.c.b16 %v747, %v743
        %v952 = vpack.c.b16 %v748, %v744
        %v953 = vpack.c.b16 %v749, %v745
        %v954 = vpack.c.b16 %v750, %v746
        %v955 = vpack.c.b16 %v755, %v751
        %v956 = vpack.c.b16 %v756, %v752
        %v957 = vpack.c.b16 %v757, %v753
        %v958 = vpack.c.b16 %v758, %v754
        %v959 = vpack.c.b16 %v763, %v759
        %v960 = vpack.c.b16 %v764, %v760
        %v961 = vpack.c.b16 %v765, %v761
        %v962 = vpack.c.b16 %v766, %v762
        %v963 = vpack.c.b16 %v771, %v767
        %v964 = vpack.c.b16 %v772, %v768
        %v965 = vpack.c.b16 %v773, %v769
        %v966 = vpack.c.b16 %v774, %v770
        %v967 = vpack.c.b16 %v779, %v775
        %v968 = vpack.c.b16 %v780, %v776
        %v969 = vpack.c.b16 %v781, %v777
        %v970 = vpack.c.b16 %v782, %v778
        %v971 = vpack.c.b16 %v787, %v783
        %v972 = vpack.c.b16 %v788, %v784
        %v973 = vpack.c.b16 %v789, %v785
        %v974 = vpack.c.b16 %v790, %v786
        %v975 = vpack.c.b16 %v795, %v791
        %v976 = vpack.c.b16 %v796, %v792
        %v977 = vpack.c.b16 %v797, %v793
        %v978 = vpack.c.b16 %v798, %v794
        %v979 = vpack.c.b16 %v803, %v799
        %v980 = vpack.c.b16 %v804, %v800
        %v981 = vpack.c.b16 %v805, %v801
        %v982 = vpack.c.b16 %v806, %v802
        %v983 = vpack.c.b16 %v811, %v807
        %v984 = vpack.c.b16 %v812, %v808
        %v985 = vpack.c.b16 %v813, %v809
        %v986 = vpack.c.b16 %v814, %v810
        %v987 = vpack.c.b16 %v819, %v815
        %v988 = vpack.c.b16 %v820, %v816
        %v989 = vpack.c.b16 %v821, %v817
        %v990 = vpack.c.b16 %v822, %v818
        %v991 = vpack.c.b16 %v827, %v823
        %v992 = vpack.c.b16 %v828, %v824
        %v993 = vpack.c.b16 %v829, %v825
        %v994 = vpack.c.b16 %v830, %v826
        %v995 = vpack.c.b16 %v835, %v831
        %v996 = vpack.c.b16 %v836, %v832
        %v997 = vpack.c.b16 %v837, %v833
        %v998 = vpack.c.b16 %v838, %v834
        %v999 = vpack.c.b16 %v843, %v839
        %v1000 = vpack.c.b16 %v844, %v840
        %v1001 = vpack.c.b16 %v845, %v841
        %v1002 = vpack.c.b16 %v846, %v842
        %v1003 = vpack.c.b16 %v851, %v847
        %v1004 = vpack.c.b16 %v852, %v848
        %v1005 = vpack.c.b16 %v853, %v849
        %v1006 = vpack.c.b16 %v854, %v850
        %v1007 = vpack.c.b16 %v859, %v855
        %v1008 = vpack.c.b16 %v860, %v856
        %v1009 = vpack.c.b16 %v861, %v857
        %v1010 = vpack.c.b16 %v862, %v858
        %v1011 = vpack.c.b16 %v867, %v863
        %v1012 = vpack.c.b16 %v868, %v864
        %v1013 = vpack.c.b16 %v869, %v865
        %v1014 = vpack.c.b16 %v870, %v866
        %v1015 = vpack.c.b16 %v875, %v871
        %v1016 = vpack.c.b16 %v876, %v872
        %v1017 = vpack.c.b16 %v877, %v873
        %v1018 = vpack.c.b16 %v878, %v874
        %v1019 = vpack.c.b16 %v883, %v879
        %v1020 = vpack.c.b16 %v884, %v880
        %v1021 = vpack.c.b16 %v885, %v881
        %v1022 = vpack.c.b16 %v886, %v882
        %v1023 = vpack.c.b16 %v891, %v887
        %v1024 = vpack.c.b16 %v892, %v888
        %v1025 = vpack.c.b16 %v893, %v889
        %v1026 = vpack.c.b16 %v894, %v890
        %v1027 = vpack.c.b16 %v899, %v895
        %v1028 = vpack.c.b16 %v900, %v896
        %v1029 = vpack.c.b16 %v901, %v897
        %v1030 = vpack.c.b16 %v902, %v898
        %1159 = vmatprep.subr.bf16.mxu0 %v904
        %1160 = vmatpush1.bf16.msra.mxu0 %v903
        %1161 = vmatprep.subr.bf16.mxu0 %v908
        %1162 = vmatpush1.bf16.msra.mxu0 %v907
        %1163 = vmatprep.subr.bf16.mxu0 %v912
        %1164 = vmatpush1.bf16.msra.mxu0 %v911
        %1165 = vmatprep.subr.bf16.mxu0 %v916
        %1166 = vmatpush1.bf16.msra.mxu0 %v915
        %1167 = vmatprep.subr.bf16.mxu0 %v920
        %1168 = vmatpush1.bf16.msra.mxu0 %v919
        %1169 = vmatprep.subr.bf16.mxu0 %v924
        %1170 = vmatpush1.bf16.msra.mxu0 %v923
        %1171 = vmatprep.subr.bf16.mxu0 %v928
        %1172 = vmatpush1.bf16.msra.mxu0 %v927
        %1173 = vmatprep.subr.bf16.mxu0 %v932
        %1174 = vmatpush1.bf16.msra.mxu0 %v931
        %1175 = vmatprep.subr.bf16.mxu0 %v936
        %1176 = vmatpush1.bf16.msra.mxu0 %v935
        %1177 = vmatprep.subr.bf16.mxu0 %v940
        %1178 = vmatpush1.bf16.msra.mxu0 %v939
        %1179 = vmatprep.subr.bf16.mxu0 %v944
        %1180 = vmatpush1.bf16.msra.mxu0 %v943
        %1181 = vmatprep.subr.bf16.mxu0 %v948
        %1182 = vmatpush1.bf16.msra.mxu0 %v947
        %1183 = vmatprep.subr.bf16.mxu0 %v952
        %1184 = vmatpush1.bf16.msra.mxu0 %v951
        %1185 = vmatprep.subr.bf16.mxu0 %v956
        %1186 = vmatpush1.bf16.msra.mxu0 %v955
        %1187 = vmatprep.subr.bf16.mxu0 %v960
        %1188 = vmatpush1.bf16.msra.mxu0 %v959
        %1189 = vmatprep.subr.bf16.mxu0 %v964
        %1190 = vmatpush1.bf16.msra.mxu0 %v963
        %1191 = vmatprep.mubr.bf16.mxu0 %v512
        %1192 = vmatmul.mubr.bf16.gmra.mrb[0].mxu0 %v511
        %v1193 = vpop.f32.mrb[0].mxu0
        %v1194 = vadd.f32 0.0, %v1193
        %v1195 = vpop.f32.mrb[0].mxu0
        %v1196 = vadd.f32 0.0, %v1195
        %v1197 = vpop.f32.mrb[0].mxu0
        %v1198 = vpop.f32.mrb[0].mxu0
        %1199 = vdwg.mxu0
        %1200 = vmatprep.subr.bf16.mxu0 %v968
        %1201 = vmatpush1.bf16.msra.mxu0 %v967
        %1202 = vmatprep.subr.bf16.mxu0 %v972
        %1203 = vmatpush1.bf16.msra.mxu0 %v971
        %1204 = vmatprep.subr.bf16.mxu0 %v976
        %1205 = vmatpush1.bf16.msra.mxu0 %v975
        %1206 = vmatprep.subr.bf16.mxu0 %v980
        %1207 = vmatpush1.bf16.msra.mxu0 %v979
        %1208 = vmatprep.subr.bf16.mxu0 %v984
        %1209 = vmatpush1.bf16.msra.mxu0 %v983
        %1210 = vmatprep.subr.bf16.mxu0 %v988
        %1211 = vmatpush1.bf16.msra.mxu0 %v987
        %1212 = vmatprep.subr.bf16.mxu0 %v992
        %1213 = vmatpush1.bf16.msra.mxu0 %v991
        %1214 = vmatprep.subr.bf16.mxu0 %v996
        %1215 = vmatpush1.bf16.msra.mxu0 %v995
        %1216 = vmatprep.subr.bf16.mxu0 %v1000
        %1217 = vmatpush1.bf16.msra.mxu0 %v999
        %1218 = vmatprep.subr.bf16.mxu0 %v1004
        %1219 = vmatpush1.bf16.msra.mxu0 %v1003
        %1220 = vmatprep.subr.bf16.mxu0 %v1008
        %1221 = vmatpush1.bf16.msra.mxu0 %v1007
        %1222 = vmatprep.subr.bf16.mxu0 %v1012
        %1223 = vmatpush1.bf16.msra.mxu0 %v1011
        %1224 = vmatprep.subr.bf16.mxu0 %v1016
        %1225 = vmatpush1.bf16.msra.mxu0 %v1015
        %1226 = vmatprep.subr.bf16.mxu0 %v1020
        %1227 = vmatpush1.bf16.msra.mxu0 %v1019
        %1228 = vmatprep.subr.bf16.mxu0 %v1024
        %1229 = vmatpush1.bf16.msra.mxu0 %v1023
        %1230 = vmatprep.subr.bf16.mxu0 %v1028
        %1231 = vmatpush1.bf16.msra.mxu0 %v1027
        %1232 = vmatprep.mubr.bf16.mxu0 %v514
        %1233 = vmatmul.mubr.bf16.gmra.mrb[0].mxu0 %v513
        %v1234 = vpop.f32.mrb[0].mxu0
        %v1235 = vadd.f32 %v1194, %v1234
        %v1236 = vpop.f32.mrb[0].mxu0
        %v1237 = vadd.f32 %v1196, %v1236
        %v1238 = vpop.f32.mrb[0].mxu0
        %v1239 = vpop.f32.mrb[0].mxu0
        %1240 = vdwg.mxu0
        %1241 = vmatprep.subr.bf16.mxu0 %v906
        %1242 = vmatpush1.bf16.msra.mxu0 %v905
        %1243 = vmatprep.subr.bf16.mxu0 %v910
        %1244 = vmatpush1.bf16.msra.mxu0 %v909
        %1245 = vmatprep.subr.bf16.mxu0 %v914
        %1246 = vmatpush1.bf16.msra.mxu0 %v913
        %1247 = vmatprep.subr.bf16.mxu0 %v918
        %1248 = vmatpush1.bf16.msra.mxu0 %v917
        %1249 = vmatprep.subr.bf16.mxu0 %v922
        %1250 = vmatpush1.bf16.msra.mxu0 %v921
        %1251 = vmatprep.subr.bf16.mxu0 %v926
        %1252 = vmatpush1.bf16.msra.mxu0 %v925
        %1253 = vmatprep.subr.bf16.mxu0 %v930
        %1254 = vmatpush1.bf16.msra.mxu0 %v929
        %1255 = vmatprep.subr.bf16.mxu0 %v934
        %1256 = vmatpush1.bf16.msra.mxu0 %v933
        %1257 = vmatprep.subr.bf16.mxu0 %v938
        %1258 = vmatpush1.bf16.msra.mxu0 %v937
        %1259 = vmatprep.subr.bf16.mxu0 %v942
        %1260 = vmatpush1.bf16.msra.mxu0 %v941
        %1261 = vmatprep.subr.bf16.mxu0 %v946
        %1262 = vmatpush1.bf16.msra.mxu0 %v945
        %1263 = vmatprep.subr.bf16.mxu0 %v950
        %1264 = vmatpush1.bf16.msra.mxu0 %v949
        %1265 = vmatprep.subr.bf16.mxu0 %v954
        %1266 = vmatpush1.bf16.msra.mxu0 %v953
        %1267 = vmatprep.subr.bf16.mxu0 %v958
        %1268 = vmatpush1.bf16.msra.mxu0 %v957
        %1269 = vmatprep.subr.bf16.mxu0 %v962
        %1270 = vmatpush1.bf16.msra.mxu0 %v961
        %1271 = vmatprep.subr.bf16.mxu0 %v966
        %1272 = vmatpush1.bf16.msra.mxu0 %v965
        %1273 = vmatprep.mubr.bf16.mxu0 %v512
        %1274 = vmatmul.mubr.bf16.gmra.mrb[0].mxu0 %v511
        %v1275 = vpop.f32.mrb[0].mxu0
        %v1276 = vadd.f32 0.0, %v1275
        %v1277 = vpop.f32.mrb[0].mxu0
        %v1278 = vadd.f32 0.0, %v1277
        %v1279 = vpop.f32.mrb[0].mxu0
        %v1280 = vpop.f32.mrb[0].mxu0
        %1281 = vdwg.mxu0
        %1282 = vmatprep.subr.bf16.mxu0 %v970
        %1283 = vmatpush1.bf16.msra.mxu0 %v969
        %1284 = vmatprep.subr.bf16.mxu0 %v974
        %1285 = vmatpush1.bf16.msra.mxu0 %v973
        %1286 = vmatprep.subr.bf16.mxu0 %v978
        %1287 = vmatpush1.bf16.msra.mxu0 %v977
        %1288 = vmatprep.subr.bf16.mxu0 %v982
        %1289 = vmatpush1.bf16.msra.mxu0 %v981
        %1290 = vmatprep.subr.bf16.mxu0 %v986
        %1291 = vmatpush1.bf16.msra.mxu0 %v985
        %1292 = vmatprep.subr.bf16.mxu0 %v990
        %1293 = vmatpush1.bf16.msra.mxu0 %v989
        %1294 = vmatprep.subr.bf16.mxu0 %v994
        %1295 = vmatpush1.bf16.msra.mxu0 %v993
        %1296 = vmatprep.subr.bf16.mxu0 %v998
        %1297 = vmatpush1.bf16.msra.mxu0 %v997
        %1298 = vmatprep.subr.bf16.mxu0 %v1002
        %1299 = vmatpush1.bf16.msra.mxu0 %v1001
        %1300 = vmatprep.subr.bf16.mxu0 %v1006
        %1301 = vmatpush1.bf16.msra.mxu0 %v1005
        %1302 = vmatprep.subr.bf16.mxu0 %v1010
        %1303 = vmatpush1.bf16.msra.mxu0 %v1009
        %1304 = vmatprep.subr.bf16.mxu0 %v1014
        %1305 = vmatpush1.bf16.msra.mxu0 %v1013
        %1306 = vmatprep.subr.bf16.mxu0 %v1018
        %1307 = vmatpush1.bf16.msra.mxu0 %v1017
        %1308 = vmatprep.subr.bf16.mxu0 %v1022
        %1309 = vmatpush1.bf16.msra.mxu0 %v1021
        %1310 = vmatprep.subr.bf16.mxu0 %v1026
        %1311 = vmatpush1.bf16.msra.mxu0 %v1025
        %1312 = vmatprep.subr.bf16.mxu0 %v1030
        %1313 = vmatpush1.bf16.msra.mxu0 %v1029
        %1314 = vmatprep.mubr.bf16.mxu0 %v514
        %1315 = vmatmul.mubr.bf16.gmra.mrb[0].mxu0 %v513
        %v1316 = vpop.f32.mrb[0].mxu0
        %v1317 = vadd.f32 %v1276, %v1316
        %v1318 = vpop.f32.mrb[0].mxu0
        %v1319 = vadd.f32 %v1278, %v1318
        %v1320 = vpop.f32.mrb[0].mxu0
        %v1321 = vpop.f32.mrb[0].mxu0
        %1322 = vdwg.mxu0
        %v1323 = vadd.f32 %v371, %v1235
        %v1324 = vadd.f32 %v372, %v1237
        %v1325 = vadd.f32 %v373, %v1317
        %v1326 = vadd.f32 %v374, %v1319
        %1327 = vst [vmem:[#allocation2] sm:$0xff] %v1323
        %1328 = vst [vmem:[#allocation2 + $0x8] sm:$0xff] %v1324
        %1329 = vst [vmem:[#allocation2 + $0x10] sm:$0xff] %v1325
        %1330 = vst [vmem:[#allocation2 + $0x18] sm:$0xff] %v1326
        %p1331 = scmp.eq.s32.totalorder %s27, 1
        // Predicated region
        $region61: #{classifier_forward.1} parent=47 // pred_check
          %p1332 = pneg %p1331
        $region62: #{classifier_forward.1} parent=47 // pred_check_branch
          %1334 = sbr.rel (%p1332) target = $region64
        $region63: #{classifier_forward.1} parent=47 // pred_region
          %v1335 = vld [vmem:[#allocation2] sm:$0xff]
          %v1336 = vld [vmem:[#allocation2 + $0x8] sm:$0xff]
          %v1337 = vld [vmem:[#allocation2 + $0x10] sm:$0xff]
          %v1338 = vld [vmem:[#allocation2 + $0x18] sm:$0xff]
          %v1339 = vld [vmem:[%s2] sm:$0xf]
          %v1341 = vlaneseq
          %v1342 = vshrl.u32 %v1341, 7
          %v1343 = vsub.s32 0, %v1342
          %v1344 = vrot.slane %v1339, %v1343
          %v1345 = vlaneseq
          %v1346 = vshrl.u32 %v1345, 7
          %v1347 = vsub.s32 1, %v1346
          %v1348 = vrot.slane %v1339, %v1347
          %v1349 = vlaneseq
          %v1350 = vshrl.u32 %v1349, 7
          %v1351 = vsub.s32 2, %v1350
          %v1352 = vrot.slane %v1339, %v1351
          %v1353 = vlaneseq
          %v1354 = vshrl.u32 %v1353, 7
          %v1355 = vsub.s32 3, %v1354
          %v1356 = vrot.slane %v1339, %v1355
          %v1361 = vadd.f32 %v1335, %v1344
          %v1362 = vadd.f32 %v1336, %v1348
          %v1363 = vadd.f32 %v1337, %v1352
          %v1364 = vadd.f32 %v1338, %v1356
          %v1365 = vmax.f32 %v1361, 0.0
          %v1366 = vmax.f32 %v1362, 0.0
          %v1367 = vmax.f32 %v1363, 0.0
          %v1368 = vmax.f32 %v1364, 0.0
          %v1369 = vld [vmem:[#allocation5] sm:$0xff]
          %v1370 = vld [vmem:[#allocation5 + $0x8] sm:$0xff]
          %v1371 = vld [vmem:[#allocation5 + $0x10] sm:$0xff]
          %v1372 = vld [vmem:[#allocation5 + $0x18] sm:$0xff]
          %v1373 = vld [vmem:[#allocation5 + $0x20] sm:$0xff]
          %v1374 = vld [vmem:[#allocation5 + $0x28] sm:$0xff]
          %v1375 = vld [vmem:[#allocation5 + $0x30] sm:$0xff]
          %v1376 = vld [vmem:[#allocation5 + $0x38] sm:$0xff]
          %v1377 = vld [vmem:[#allocation5 + $0x40] sm:$0xff]
          %v1378 = vld [vmem:[#allocation5 + $0x48] sm:$0xff]
          %v1379 = vld [vmem:[#allocation5 + $0x50] sm:$0xff]
          %v1380 = vld [vmem:[#allocation5 + $0x58] sm:$0xff]
          %v1381 = vld [vmem:[#allocation5 + $0x60] sm:$0xff]
          %v1382 = vld [vmem:[#allocation5 + $0x68] sm:$0xff]
          %v1383 = vld [vmem:[#allocation5 + $0x70] sm:$0xff]
          %v1384 = vld [vmem:[#allocation5 + $0x78] sm:$0xff]
          %v1385 = vld [vmem:[#allocation5 + $0x80] sm:$0xff]
          %v1386 = vld [vmem:[#allocation5 + $0x88] sm:$0xff]
          %v1387 = vld [vmem:[#allocation5 + $0x90] sm:$0xff]
          %v1388 = vld [vmem:[#allocation5 + $0x98] sm:$0xff]
          %v1389 = vld [vmem:[#allocation5 + $0xa0] sm:$0xff]
          %v1390 = vld [vmem:[#allocation5 + $0xa8] sm:$0xff]
          %v1391 = vld [vmem:[#allocation5 + $0xb0] sm:$0xff]
          %v1392 = vld [vmem:[#allocation5 + $0xb8] sm:$0xff]
          %v1393 = vld [vmem:[#allocation5 + $0xc0] sm:$0xff]
          %v1394 = vld [vmem:[#allocation5 + $0xc8] sm:$0xff]
          %v1395 = vld [vmem:[#allocation5 + $0xd0] sm:$0xff]
          %v1396 = vld [vmem:[#allocation5 + $0xd8] sm:$0xff]
          %v1397 = vld [vmem:[#allocation5 + $0xe0] sm:$0xff]
          %v1398 = vld [vmem:[#allocation5 + $0xe8] sm:$0xff]
          %v1399 = vld [vmem:[#allocation5 + $0xf0] sm:$0xff]
          %v1400 = vld [vmem:[#allocation5 + $0xf8] sm:$0xff]
          %v1401 = vld [vmem:[#allocation5 + $0x100] sm:$0xff]
          %v1402 = vld [vmem:[#allocation5 + $0x108] sm:$0xff]
          %v1403 = vld [vmem:[#allocation5 + $0x110] sm:$0xff]
          %v1404 = vld [vmem:[#allocation5 + $0x118] sm:$0xff]
          %v1405 = vld [vmem:[#allocation5 + $0x120] sm:$0xff]
          %v1406 = vld [vmem:[#allocation5 + $0x128] sm:$0xff]
          %v1407 = vld [vmem:[#allocation5 + $0x130] sm:$0xff]
          %v1408 = vld [vmem:[#allocation5 + $0x138] sm:$0xff]
          %v1409 = vld [vmem:[#allocation5 + $0x140] sm:$0xff]
          %v1410 = vld [vmem:[#allocation5 + $0x148] sm:$0xff]
          %v1411 = vld [vmem:[#allocation5 + $0x150] sm:$0xff]
          %v1412 = vld [vmem:[#allocation5 + $0x158] sm:$0xff]
          %v1413 = vld [vmem:[#allocation5 + $0x160] sm:$0xff]
          %v1414 = vld [vmem:[#allocation5 + $0x168] sm:$0xff]
          %v1415 = vld [vmem:[#allocation5 + $0x170] sm:$0xff]
          %v1416 = vld [vmem:[#allocation5 + $0x178] sm:$0xff]
          %v1417 = vld [vmem:[#allocation5 + $0x180] sm:$0xff]
          %v1418 = vld [vmem:[#allocation5 + $0x188] sm:$0xff]
          %v1419 = vld [vmem:[#allocation5 + $0x190] sm:$0xff]
          %v1420 = vld [vmem:[#allocation5 + $0x198] sm:$0xff]
          %v1421 = vld [vmem:[#allocation5 + $0x1a0] sm:$0xff]
          %v1422 = vld [vmem:[#allocation5 + $0x1a8] sm:$0xff]
          %v1423 = vld [vmem:[#allocation5 + $0x1b0] sm:$0xff]
          %v1424 = vld [vmem:[#allocation5 + $0x1b8] sm:$0xff]
          %v1425 = vld [vmem:[#allocation5 + $0x1c0] sm:$0xff]
          %v1426 = vld [vmem:[#allocation5 + $0x1c8] sm:$0xff]
          %v1427 = vld [vmem:[#allocation5 + $0x1d0] sm:$0xff]
          %v1428 = vld [vmem:[#allocation5 + $0x1d8] sm:$0xff]
          %v1429 = vld [vmem:[#allocation5 + $0x1e0] sm:$0xff]
          %v1430 = vld [vmem:[#allocation5 + $0x1e8] sm:$0xff]
          %v1431 = vld [vmem:[#allocation5 + $0x1f0] sm:$0xff]
          %v1432 = vld [vmem:[#allocation5 + $0x1f8] sm:$0xff]
          %v1433 = vld [vmem:[%s4] sm:$0x3]
          %v1434 = vpack.c.bf16 %v1365, %v1365
          %v1435 = vpack.c.bf16 %v1366, %v1366
          %v1436 = vpack.c.bf16 %v1367, %v1367
          %v1437 = vpack.c.bf16 %v1368, %v1368
          %v1439 = vlaneseq
          %v1440 = vshrl.u32 %v1439, 7
          %v1441 = vsub.s32 0, %v1440
          %v1442 = vrot.slane %v1433, %v1441
          %v1443 = vlaneseq
          %v1444 = vshrl.u32 %v1443, 7
          %v1445 = vsub.s32 1, %v1444
          %v1446 = vrot.slane %v1433, %v1445
          %v1513 = vunpack.c.l.b16 %v1369
          %v1514 = vunpack.c.h.b16 %v1369
          %v1515 = vunpack.c.l.b16 %v1370
          %v1516 = vunpack.c.h.b16 %v1370
          %v1517 = vunpack.c.l.b16 %v1371
          %v1518 = vunpack.c.h.b16 %v1371
          %v1519 = vunpack.c.l.b16 %v1372
          %v1520 = vunpack.c.h.b16 %v1372
          %v1521 = vunpack.c.l.b16 %v1373
          %v1522 = vunpack.c.h.b16 %v1373
          %v1523 = vunpack.c.l.b16 %v1374
          %v1524 = vunpack.c.h.b16 %v1374
          %v1525 = vunpack.c.l.b16 %v1375
          %v1526 = vunpack.c.h.b16 %v1375
          %v1527 = vunpack.c.l.b16 %v1376
          %v1528 = vunpack.c.h.b16 %v1376
          %v1529 = vunpack.c.l.b16 %v1377
          %v1530 = vunpack.c.h.b16 %v1377
          %v1531 = vunpack.c.l.b16 %v1378
          %v1532 = vunpack.c.h.b16 %v1378
          %v1533 = vunpack.c.l.b16 %v1379
          %v1534 = vunpack.c.h.b16 %v1379
          %v1535 = vunpack.c.l.b16 %v1380
          %v1536 = vunpack.c.h.b16 %v1380
          %v1537 = vunpack.c.l.b16 %v1381
          %v1538 = vunpack.c.h.b16 %v1381
          %v1539 = vunpack.c.l.b16 %v1382
          %v1540 = vunpack.c.h.b16 %v1382
          %v1541 = vunpack.c.l.b16 %v1383
          %v1542 = vunpack.c.h.b16 %v1383
          %v1543 = vunpack.c.l.b16 %v1384
          %v1544 = vunpack.c.h.b16 %v1384
          %v1545 = vunpack.c.l.b16 %v1385
          %v1546 = vunpack.c.h.b16 %v1385
          %v1547 = vunpack.c.l.b16 %v1386
          %v1548 = vunpack.c.h.b16 %v1386
          %v1549 = vunpack.c.l.b16 %v1387
          %v1550 = vunpack.c.h.b16 %v1387
          %v1551 = vunpack.c.l.b16 %v1388
          %v1552 = vunpack.c.h.b16 %v1388
          %v1553 = vunpack.c.l.b16 %v1389
          %v1554 = vunpack.c.h.b16 %v1389
          %v1555 = vunpack.c.l.b16 %v1390
          %v1556 = vunpack.c.h.b16 %v1390
          %v1557 = vunpack.c.l.b16 %v1391
          %v1558 = vunpack.c.h.b16 %v1391
          %v1559 = vunpack.c.l.b16 %v1392
          %v1560 = vunpack.c.h.b16 %v1392
          %v1561 = vunpack.c.l.b16 %v1393
          %v1562 = vunpack.c.h.b16 %v1393
          %v1563 = vunpack.c.l.b16 %v1394
          %v1564 = vunpack.c.h.b16 %v1394
          %v1565 = vunpack.c.l.b16 %v1395
          %v1566 = vunpack.c.h.b16 %v1395
          %v1567 = vunpack.c.l.b16 %v1396
          %v1568 = vunpack.c.h.b16 %v1396
          %v1569 = vunpack.c.l.b16 %v1397
          %v1570 = vunpack.c.h.b16 %v1397
          %v1571 = vunpack.c.l.b16 %v1398
          %v1572 = vunpack.c.h.b16 %v1398
          %v1573 = vunpack.c.l.b16 %v1399
          %v1574 = vunpack.c.h.b16 %v1399
          %v1575 = vunpack.c.l.b16 %v1400
          %v1576 = vunpack.c.h.b16 %v1400
          %v1577 = vunpack.c.l.b16 %v1401
          %v1578 = vunpack.c.h.b16 %v1401
          %v1579 = vunpack.c.l.b16 %v1402
          %v1580 = vunpack.c.h.b16 %v1402
          %v1581 = vunpack.c.l.b16 %v1403
          %v1582 = vunpack.c.h.b16 %v1403
          %v1583 = vunpack.c.l.b16 %v1404
          %v1584 = vunpack.c.h.b16 %v1404
          %v1585 = vunpack.c.l.b16 %v1405
          %v1586 = vunpack.c.h.b16 %v1405
          %v1587 = vunpack.c.l.b16 %v1406
          %v1588 = vunpack.c.h.b16 %v1406
          %v1589 = vunpack.c.l.b16 %v1407
          %v1590 = vunpack.c.h.b16 %v1407
          %v1591 = vunpack.c.l.b16 %v1408
          %v1592 = vunpack.c.h.b16 %v1408
          %v1593 = vunpack.c.l.b16 %v1409
          %v1594 = vunpack.c.h.b16 %v1409
          %v1595 = vunpack.c.l.b16 %v1410
          %v1596 = vunpack.c.h.b16 %v1410
          %v1597 = vunpack.c.l.b16 %v1411
          %v1598 = vunpack.c.h.b16 %v1411
          %v1599 = vunpack.c.l.b16 %v1412
          %v1600 = vunpack.c.h.b16 %v1412
          %v1601 = vunpack.c.l.b16 %v1413
          %v1602 = vunpack.c.h.b16 %v1413
          %v1603 = vunpack.c.l.b16 %v1414
          %v1604 = vunpack.c.h.b16 %v1414
          %v1605 = vunpack.c.l.b16 %v1415
          %v1606 = vunpack.c.h.b16 %v1415
          %v1607 = vunpack.c.l.b16 %v1416
          %v1608 = vunpack.c.h.b16 %v1416
          %v1609 = vunpack.c.l.b16 %v1417
          %v1610 = vunpack.c.h.b16 %v1417
          %v1611 = vunpack.c.l.b16 %v1418
          %v1612 = vunpack.c.h.b16 %v1418
          %v1613 = vunpack.c.l.b16 %v1419
          %v1614 = vunpack.c.h.b16 %v1419
          %v1615 = vunpack.c.l.b16 %v1420
          %v1616 = vunpack.c.h.b16 %v1420
          %v1617 = vunpack.c.l.b16 %v1421
          %v1618 = vunpack.c.h.b16 %v1421
          %v1619 = vunpack.c.l.b16 %v1422
          %v1620 = vunpack.c.h.b16 %v1422
          %v1621 = vunpack.c.l.b16 %v1423
          %v1622 = vunpack.c.h.b16 %v1423
          %v1623 = vunpack.c.l.b16 %v1424
          %v1624 = vunpack.c.h.b16 %v1424
          %v1625 = vunpack.c.l.b16 %v1425
          %v1626 = vunpack.c.h.b16 %v1425
          %v1627 = vunpack.c.l.b16 %v1426
          %v1628 = vunpack.c.h.b16 %v1426
          %v1629 = vunpack.c.l.b16 %v1427
          %v1630 = vunpack.c.h.b16 %v1427
          %v1631 = vunpack.c.l.b16 %v1428
          %v1632 = vunpack.c.h.b16 %v1428
          %v1633 = vunpack.c.l.b16 %v1429
          %v1634 = vunpack.c.h.b16 %v1429
          %v1635 = vunpack.c.l.b16 %v1430
          %v1636 = vunpack.c.h.b16 %v1430
          %v1637 = vunpack.c.l.b16 %v1431
          %v1638 = vunpack.c.h.b16 %v1431
          %v1639 = vunpack.c.l.b16 %v1432
          %v1640 = vunpack.c.h.b16 %v1432
          %v1641 = vpack.c.b16 %v1515, %v1513
          %v1642 = vpack.c.b16 %v1516, %v1514
          %v1643 = vpack.c.b16 %v1519, %v1517
          %v1644 = vpack.c.b16 %v1520, %v1518
          %v1645 = vpack.c.b16 %v1523, %v1521
          %v1646 = vpack.c.b16 %v1524, %v1522
          %v1647 = vpack.c.b16 %v1527, %v1525
          %v1648 = vpack.c.b16 %v1528, %v1526
          %v1649 = vpack.c.b16 %v1531, %v1529
          %v1650 = vpack.c.b16 %v1532, %v1530
          %v1651 = vpack.c.b16 %v1535, %v1533
          %v1652 = vpack.c.b16 %v1536, %v1534
          %v1653 = vpack.c.b16 %v1539, %v1537
          %v1654 = vpack.c.b16 %v1540, %v1538
          %v1655 = vpack.c.b16 %v1543, %v1541
          %v1656 = vpack.c.b16 %v1544, %v1542
          %v1657 = vpack.c.b16 %v1547, %v1545
          %v1658 = vpack.c.b16 %v1548, %v1546
          %v1659 = vpack.c.b16 %v1551, %v1549
          %v1660 = vpack.c.b16 %v1552, %v1550
          %v1661 = vpack.c.b16 %v1555, %v1553
          %v1662 = vpack.c.b16 %v1556, %v1554
          %v1663 = vpack.c.b16 %v1559, %v1557
          %v1664 = vpack.c.b16 %v1560, %v1558
          %v1665 = vpack.c.b16 %v1563, %v1561
          %v1666 = vpack.c.b16 %v1564, %v1562
          %v1667 = vpack.c.b16 %v1567, %v1565
          %v1668 = vpack.c.b16 %v1568, %v1566
          %v1669 = vpack.c.b16 %v1571, %v1569
          %v1670 = vpack.c.b16 %v1572, %v1570
          %v1671 = vpack.c.b16 %v1575, %v1573
          %v1672 = vpack.c.b16 %v1576, %v1574
          %v1673 = vpack.c.b16 %v1579, %v1577
          %v1674 = vpack.c.b16 %v1580, %v1578
          %v1675 = vpack.c.b16 %v1583, %v1581
          %v1676 = vpack.c.b16 %v1584, %v1582
          %v1677 = vpack.c.b16 %v1587, %v1585
          %v1678 = vpack.c.b16 %v1588, %v1586
          %v1679 = vpack.c.b16 %v1591, %v1589
          %v1680 = vpack.c.b16 %v1592, %v1590
          %v1681 = vpack.c.b16 %v1595, %v1593
          %v1682 = vpack.c.b16 %v1596, %v1594
          %v1683 = vpack.c.b16 %v1599, %v1597
          %v1684 = vpack.c.b16 %v1600, %v1598
          %v1685 = vpack.c.b16 %v1603, %v1601
          %v1686 = vpack.c.b16 %v1604, %v1602
          %v1687 = vpack.c.b16 %v1607, %v1605
          %v1688 = vpack.c.b16 %v1608, %v1606
          %v1689 = vpack.c.b16 %v1611, %v1609
          %v1690 = vpack.c.b16 %v1612, %v1610
          %v1691 = vpack.c.b16 %v1615, %v1613
          %v1692 = vpack.c.b16 %v1616, %v1614
          %v1693 = vpack.c.b16 %v1619, %v1617
          %v1694 = vpack.c.b16 %v1620, %v1618
          %v1695 = vpack.c.b16 %v1623, %v1621
          %v1696 = vpack.c.b16 %v1624, %v1622
          %v1697 = vpack.c.b16 %v1627, %v1625
          %v1698 = vpack.c.b16 %v1628, %v1626
          %v1699 = vpack.c.b16 %v1631, %v1629
          %v1700 = vpack.c.b16 %v1632, %v1630
          %v1701 = vpack.c.b16 %v1635, %v1633
          %v1702 = vpack.c.b16 %v1636, %v1634
          %v1703 = vpack.c.b16 %v1639, %v1637
          %v1704 = vpack.c.b16 %v1640, %v1638
          %1769 = vmatprep.subr.bf16.mxu0 %v1642
          %1770 = vmatpush1.bf16.msra.mxu0 %v1641
          %1771 = vmatprep.subr.bf16.mxu0 %v1644
          %1772 = vmatpush1.bf16.msra.mxu0 %v1643
          %1773 = vmatprep.subr.bf16.mxu0 %v1646
          %1774 = vmatpush1.bf16.msra.mxu0 %v1645
          %1775 = vmatprep.subr.bf16.mxu0 %v1648
          %1776 = vmatpush1.bf16.msra.mxu0 %v1647
          %1777 = vmatprep.subr.bf16.mxu0 %v1650
          %1778 = vmatpush1.bf16.msra.mxu0 %v1649
          %1779 = vmatprep.subr.bf16.mxu0 %v1652
          %1780 = vmatpush1.bf16.msra.mxu0 %v1651
          %1781 = vmatprep.subr.bf16.mxu0 %v1654
          %1782 = vmatpush1.bf16.msra.mxu0 %v1653
          %1783 = vmatprep.subr.bf16.mxu0 %v1656
          %1784 = vmatpush1.bf16.msra.mxu0 %v1655
          %1785 = vmatprep.subr.bf16.mxu0 %v1658
          %1786 = vmatpush1.bf16.msra.mxu0 %v1657
          %1787 = vmatprep.subr.bf16.mxu0 %v1660
          %1788 = vmatpush1.bf16.msra.mxu0 %v1659
          %1789 = vmatprep.subr.bf16.mxu0 %v1662
          %1790 = vmatpush1.bf16.msra.mxu0 %v1661
          %1791 = vmatprep.subr.bf16.mxu0 %v1664
          %1792 = vmatpush1.bf16.msra.mxu0 %v1663
          %1793 = vmatprep.subr.bf16.mxu0 %v1666
          %1794 = vmatpush1.bf16.msra.mxu0 %v1665
          %1795 = vmatprep.subr.bf16.mxu0 %v1668
          %1796 = vmatpush1.bf16.msra.mxu0 %v1667
          %1797 = vmatprep.subr.bf16.mxu0 %v1670
          %1798 = vmatpush1.bf16.msra.mxu0 %v1669
          %1799 = vmatprep.subr.bf16.mxu0 %v1672
          %1800 = vmatpush1.bf16.msra.mxu0 %v1671
          %1801 = vmatprep.mubr.bf16.mxu0 %v1435
          %1802 = vmatmul.mubr.bf16.gmra.mrb[0].mxu0 %v1434
          %v1803 = vpop.f32.mrb[0].mxu0
          %v1804 = vadd.f32 %v1442, %v1803
          %v1805 = vpop.f32.mrb[0].mxu0
          %v1806 = vadd.f32 %v1446, %v1805
          %v1807 = vpop.f32.mrb[0].mxu0
          %v1808 = vpop.f32.mrb[0].mxu0
          %1809 = vdwg.mxu0
          %1810 = vmatprep.subr.bf16.mxu0 %v1674
          %1811 = vmatpush1.bf16.msra.mxu0 %v1673
          %1812 = vmatprep.subr.bf16.mxu0 %v1676
          %1813 = vmatpush1.bf16.msra.mxu0 %v1675
          %1814 = vmatprep.subr.bf16.mxu0 %v1678
          %1815 = vmatpush1.bf16.msra.mxu0 %v1677
          %1816 = vmatprep.subr.bf16.mxu0 %v1680
          %1817 = vmatpush1.bf16.msra.mxu0 %v1679
          %1818 = vmatprep.subr.bf16.mxu0 %v1682
          %1819 = vmatpush1.bf16.msra.mxu0 %v1681
          %1820 = vmatprep.subr.bf16.mxu0 %v1684
          %1821 = vmatpush1.bf16.msra.mxu0 %v1683
          %1822 = vmatprep.subr.bf16.mxu0 %v1686
          %1823 = vmatpush1.bf16.msra.mxu0 %v1685
          %1824 = vmatprep.subr.bf16.mxu0 %v1688
          %1825 = vmatpush1.bf16.msra.mxu0 %v1687
          %1826 = vmatprep.subr.bf16.mxu0 %v1690
          %1827 = vmatpush1.bf16.msra.mxu0 %v1689
          %1828 = vmatprep.subr.bf16.mxu0 %v1692
          %1829 = vmatpush1.bf16.msra.mxu0 %v1691
          %1830 = vmatprep.subr.bf16.mxu0 %v1694
          %1831 = vmatpush1.bf16.msra.mxu0 %v1693
          %1832 = vmatprep.subr.bf16.mxu0 %v1696
          %1833 = vmatpush1.bf16.msra.mxu0 %v1695
          %1834 = vmatprep.subr.bf16.mxu0 %v1698
          %1835 = vmatpush1.bf16.msra.mxu0 %v1697
          %1836 = vmatprep.subr.bf16.mxu0 %v1700
          %1837 = vmatpush1.bf16.msra.mxu0 %v1699
          %1838 = vmatprep.subr.bf16.mxu0 %v1702
          %1839 = vmatpush1.bf16.msra.mxu0 %v1701
          %1840 = vmatprep.subr.bf16.mxu0 %v1704
          %1841 = vmatpush1.bf16.msra.mxu0 %v1703
          %1842 = vmatprep.mubr.bf16.mxu0 %v1437
          %1843 = vmatmul.mubr.bf16.gmra.mrb[0].mxu0 %v1436
          %v1844 = vpop.f32.mrb[0].mxu0
          %v1845 = vadd.f32 %v1804, %v1844
          %v1846 = vpop.f32.mrb[0].mxu0
          %v1847 = vadd.f32 %v1806, %v1846
          %v1848 = vpop.f32.mrb[0].mxu0
          %v1849 = vpop.f32.mrb[0].mxu0
          %1850 = vdwg.mxu0
          %v1851 = vmax.f32 %v1845, 0.0
          %v1852 = vmax.f32 %v1847, 0.0
          %v1853 = vld [vmem:[%s5] sm:$0xf]
          %v1854 = vld [vmem:[%s5 + $0x4] sm:$0xf]
          %v1855 = vld [vmem:[%s5 + $0x8] sm:$0xf]
          %v1856 = vld [vmem:[%s5 + $0xc] sm:$0xf]
          %v1857 = vld [vmem:[%s5 + $0x10] sm:$0xf]
          %v1858 = vld [vmem:[%s5 + $0x14] sm:$0xf]
          %v1859 = vld [vmem:[%s5 + $0x18] sm:$0xf]
          %v1860 = vld [vmem:[%s5 + $0x1c] sm:$0xf]
          %v1861 = vld [vmem:[%s5 + $0x20] sm:$0xf]
          %v1862 = vld [vmem:[%s5 + $0x24] sm:$0xf]
          %v1863 = vld [vmem:[%s5 + $0x28] sm:$0xf]
          %v1864 = vld [vmem:[%s5 + $0x2c] sm:$0xf]
          %v1865 = vld [vmem:[%s5 + $0x30] sm:$0xf]
          %v1866 = vld [vmem:[%s5 + $0x34] sm:$0xf]
          %v1867 = vld [vmem:[%s5 + $0x38] sm:$0xf]
          %v1868 = vld [vmem:[%s5 + $0x3c] sm:$0xf]
          %v1869 = vld [vmem:[%s5 + $0x40] sm:$0xf]
          %v1870 = vld [vmem:[%s5 + $0x44] sm:$0xf]
          %v1871 = vld [vmem:[%s5 + $0x48] sm:$0xf]
          %v1872 = vld [vmem:[%s5 + $0x4c] sm:$0xf]
          %v1873 = vld [vmem:[%s5 + $0x50] sm:$0xf]
          %v1874 = vld [vmem:[%s5 + $0x54] sm:$0xf]
          %v1875 = vld [vmem:[%s5 + $0x58] sm:$0xf]
          %v1876 = vld [vmem:[%s5 + $0x5c] sm:$0xf]
          %v1877 = vld [vmem:[%s5 + $0x60] sm:$0xf]
          %v1878 = vld [vmem:[%s5 + $0x64] sm:$0xf]
          %v1879 = vld [vmem:[%s5 + $0x68] sm:$0xf]
          %v1880 = vld [vmem:[%s5 + $0x6c] sm:$0xf]
          %v1881 = vld [vmem:[%s5 + $0x70] sm:$0xf]
          %v1882 = vld [vmem:[%s5 + $0x74] sm:$0xf]
          %v1883 = vld [vmem:[%s5 + $0x78] sm:$0xf]
          %v1884 = vld [vmem:[%s5 + $0x7c] sm:$0xf]
          %v1885 = vld [vmem:[%s6] sm:$0x1]
          %v1886 = vpack.c.bf16 %v1851, %v1851
          %v1887 = vpack.c.bf16 %v1852, %v1852
          %v1889 = vlaneseq
          %v1890 = vshrl.u32 %v1889, 7
          %v1891 = vsub.s32 0, %v1890
          %v1892 = vrot.slane %v1885, %v1891
          %v1926 = vunpack.c.l.b16 %v1853
          %v1927 = vunpack.c.l.b16 %v1854
          %v1928 = vunpack.c.l.b16 %v1855
          %v1929 = vunpack.c.l.b16 %v1856
          %v1930 = vunpack.c.l.b16 %v1857
          %v1931 = vunpack.c.l.b16 %v1858
          %v1932 = vunpack.c.l.b16 %v1859
          %v1933 = vunpack.c.l.b16 %v1860
          %v1934 = vunpack.c.l.b16 %v1861
          %v1935 = vunpack.c.l.b16 %v1862
          %v1936 = vunpack.c.l.b16 %v1863
          %v1937 = vunpack.c.l.b16 %v1864
          %v1938 = vunpack.c.l.b16 %v1865
          %v1939 = vunpack.c.l.b16 %v1866
          %v1940 = vunpack.c.l.b16 %v1867
          %v1941 = vunpack.c.l.b16 %v1868
          %v1942 = vunpack.c.l.b16 %v1869
          %v1943 = vunpack.c.l.b16 %v1870
          %v1944 = vunpack.c.l.b16 %v1871
          %v1945 = vunpack.c.l.b16 %v1872
          %v1946 = vunpack.c.l.b16 %v1873
          %v1947 = vunpack.c.l.b16 %v1874
          %v1948 = vunpack.c.l.b16 %v1875
          %v1949 = vunpack.c.l.b16 %v1876
          %v1950 = vunpack.c.l.b16 %v1877
          %v1951 = vunpack.c.l.b16 %v1878
          %v1952 = vunpack.c.l.b16 %v1879
          %v1953 = vunpack.c.l.b16 %v1880
          %v1954 = vunpack.c.l.b16 %v1881
          %v1955 = vunpack.c.l.b16 %v1882
          %v1956 = vunpack.c.l.b16 %v1883
          %v1957 = vunpack.c.l.b16 %v1884
          %v1958 = vpack.c.b16 %v1927, %v1926
          %v1959 = vpack.c.b16 %v1929, %v1928
          %v1960 = vpack.c.b16 %v1931, %v1930
          %v1961 = vpack.c.b16 %v1933, %v1932
          %v1962 = vpack.c.b16 %v1935, %v1934
          %v1963 = vpack.c.b16 %v1937, %v1936
          %v1964 = vpack.c.b16 %v1939, %v1938
          %v1965 = vpack.c.b16 %v1941, %v1940
          %v1966 = vpack.c.b16 %v1943, %v1942
          %v1967 = vpack.c.b16 %v1945, %v1944
          %v1968 = vpack.c.b16 %v1947, %v1946
          %v1969 = vpack.c.b16 %v1949, %v1948
          %v1970 = vpack.c.b16 %v1951, %v1950
          %v1971 = vpack.c.b16 %v1953, %v1952
          %v1972 = vpack.c.b16 %v1955, %v1954
          %v1973 = vpack.c.b16 %v1957, %v1956
          %1990 = vmatprep.subr.bf16.mxu0 0
          %1991 = vmatpush1.bf16.msra.mxu0 %v1958
          %1992 = vmatprep.subr.bf16.mxu0 0
          %1993 = vmatpush1.bf16.msra.mxu0 %v1959
          %1994 = vmatprep.subr.bf16.mxu0 0
          %1995 = vmatpush1.bf16.msra.mxu0 %v1960
          %1996 = vmatprep.subr.bf16.mxu0 0
          %1997 = vmatpush1.bf16.msra.mxu0 %v1961
          %1998 = vmatprep.subr.bf16.mxu0 0
          %1999 = vmatpush1.bf16.msra.mxu0 %v1962
          %2000 = vmatprep.subr.bf16.mxu0 0
          %2001 = vmatpush1.bf16.msra.mxu0 %v1963
          %2002 = vmatprep.subr.bf16.mxu0 0
          %2003 = vmatpush1.bf16.msra.mxu0 %v1964
          %2004 = vmatprep.subr.bf16.mxu0 0
          %2005 = vmatpush1.bf16.msra.mxu0 %v1965
          %2006 = vmatprep.subr.bf16.mxu0 0
          %2007 = vmatpush1.bf16.msra.mxu0 %v1966
          %2008 = vmatprep.subr.bf16.mxu0 0
          %2009 = vmatpush1.bf16.msra.mxu0 %v1967
          %2010 = vmatprep.subr.bf16.mxu0 0
          %2011 = vmatpush1.bf16.msra.mxu0 %v1968
          %2012 = vmatprep.subr.bf16.mxu0 0
          %2013 = vmatpush1.bf16.msra.mxu0 %v1969
          %2014 = vmatprep.subr.bf16.mxu0 0
          %2015 = vmatpush1.bf16.msra.mxu0 %v1970
          %2016 = vmatprep.subr.bf16.mxu0 0
          %2017 = vmatpush1.bf16.msra.mxu0 %v1971
          %2018 = vmatprep.subr.bf16.mxu0 0
          %2019 = vmatpush1.bf16.msra.mxu0 %v1972
          %2020 = vmatprep.subr.bf16.mxu0 0
          %2021 = vmatpush1.bf16.msra.mxu0 %v1973
          %2022 = vmatprep.mubr.bf16.mxu0 %v1887
          %2023 = vmatmul.mubr.bf16.gmra.mrb[0].mxu0 %v1886
          %v2024 = vpop.f32.mrb[0].mxu0
          %v2025 = vadd.f32 %v1892, %v2024
          %v2026 = vpop.f32.mrb[0].mxu0
          %v2027 = vpop.f32.mrb[0].mxu0
          %v2028 = vpop.f32.mrb[0].mxu0
          %2029 = vdwg.mxu0
          %v2030 = vlaneseq
          %v2031 = vand.u32 %v2030, 127
          %vm2032 = vcmp.lt.s32.totalorder %v2031, 10
          %v2033 = vsel %vm2032, %v2025, -1e+30
          %2034 = vmax.xlane.f32.xlu0 %v2033
          %v2035 = vpop.xlane.xlu0 %2034
          %v2036 = vsub.f32 %v2033, %v2035
          %v2037 = vmul.f32 %v2036, 1.442695
          %v2038 = vpow.pop %v2037
          %2039 = vadd.xlane.f32.xlu0 %v2038
          %v2040 = vpop.xlane.xlu0 %2039
          %v2041 = vrcp.pop %v2040
          %v2042 = vmul.f32 %v2040, %v2041
          %v2043 = vsub.f32 2.0, %v2042
          %v2044 = vmul.f32 %v2041, %v2043
          %v2045 = vmul.f32 %v2038, %v2044
          %2046 = vst [vmem:[%s361] sm:$0xff] %v2045
        $region64: #{classifier_forward.1} parent=47 // pred_fallthru
          _
        %p2047 = scmp.lt.s32.totalorder %s26, 0
        %s2048 = scalar_select %p2047, %s26, 0
        %s2049 = smul.addr %s2048, 8
        %s2050 = scalar_lea.vmem %s7, %s2049
        // Predicated region
        $region65: #{classifier_forward.1} parent=47 // pred_check
          %p2051 = pneg %p211
        $region66: #{classifier_forward.1} parent=47 // pred_check_branch
          %2053 = sbr.rel (%p2051) target = $region68
        $region67: #{classifier_forward.1} parent=47 // pred_region
          _
        $region68: #{classifier_forward.1} parent=47 // pred_fallthru
          _
        // Predicated region
        $region69: #{classifier_forward.1} parent=47 // pred_check
          %p2054 = pneg %p211
        $region70: #{classifier_forward.1} parent=47 // pred_check_branch
          %2056 = sbr.rel (%p2054) target = $region72
        $region71: #{classifier_forward.1} parent=47 // pred_region
          %p2057 = scmp.lt.s32.totalorder %s26, 0
          %s2058 = scalar_select %p2057, %s26, 0
          %s2059 = smul.addr %s2058, 8
          %s2060 = scalar_lea.vmem %s7, %s2059
        $region72: #{classifier_forward.1} parent=47 // pred_fallthru
          _
      $region48: #{classifier_forward.1} parent=5 // pred_fallthru
        _
      %p2061 = scmp.le.s32.totalorder 2, %s17
      // Predicated region
      $region73: #{classifier_forward.1} parent=5 // pred_check
        %p2062 = pneg %p2061
      $region74: #{classifier_forward.1} parent=5 // pred_check_branch
        %2064 = sbr.rel (%p2062) target = $region76
      $region75: #{classifier_forward.1} parent=5 // pred_region
        %s2065 = ssub.s32 %s17, 2
      $region76: #{classifier_forward.1} parent=5 // pred_fallthru
        _
    $region6: #{classifier_forward.1} parent=1 // loop_footer
      %s21 = sadd.s32 1, %s17
    $region7: #{classifier_forward.1} parent=1 // loop_footer_branch
      %16 = sbr.rel target = $region3
    $region8: #{classifier_forward.1} parent=1 // loop_exit
      _
    %2066 = vsyncpa [#allocation4], 1
    %s2067 = scalar_lea.sflag [#allocation4], 1
    %2068 = vsyncpa %s2067, 1
    %2069 = vsyncpa [#allocation6], 1

</llo_original>
